<compile_context>
chip_gen: v7x
topology: tpu7x:2x2x1
jax: 0.10.0
libtpu: 0.0.40
codegen_flags: <defaults>
</compile_context>

<pallas_src>
import functools

import numpy as np
import jax
import jax.numpy as jnp
from jax import lax
from jax.experimental import pallas as pl
from jax.experimental.pallas import tpu as pltpu


def _resnet_block_kernel(x_ref, w1_ref, b1_ref, w2_ref, b2_ref, m_ref, out_ref,
                         patches_ref, *, C, H, W, nb, offs1, offs2,
                         leaky_slope):
    """x_ref/out_ref: (nb, C, HW); w*: (C, K*K*C); b*: (C, 1);
    m_ref: (2*K*K*C, HW) precomputed validity masks (tap-major, channel-bcast);
    patches_ref: (K*K*C, HW) VMEM im2col scratch, reused by both convs."""
    HW = H * W
    KK = len(offs1)

    # Hoist weight / bias loads once per grid step (shared by all nb images).
    w1 = w1_ref[...]
    w2 = w2_ref[...]
    b1 = b1_ref[...]
    b2 = b2_ref[...]

    def conv(inp, w, b, conv_idx, offs):
        # Build the (K*K*C, HW) im2col slab directly in VMEM scratch.
        for t, (dh, dw) in enumerate(offs):
            row = (conv_idx * KK + t) * C          # static, multiple of C
            if dh == 0 and dw == 0:
                # Center tap: no shift, mask is all-ones by construction.
                patches_ref[pl.ds(t * C, C), :] = inp
            else:
                off = dh * W + dw
                shifted = pltpu.roll(inp, shift=(-off) % HW, axis=1)
                patches_ref[pl.ds(t * C, C), :] = (
                    shifted * m_ref[pl.ds(row, C), :])
        # One lane-dense MXU matmul per conv: (C, K*K*C) @ (K*K*C, HW).
        y = jnp.dot(w, patches_ref[...], preferred_element_type=jnp.float32)
        return y + b                               # bias bcast over lanes

    for n in range(nb):                            # nb static & tiny -> unroll
        x = x_ref[n]                               # (C, HW)
        y1 = conv(x, w1, b1, 0, offs1)
        mid = jnp.maximum(y1, leaky_slope * y1)    # LeakyReLU(negative_slope)
        out_ref[n] = (conv(mid, w2, b2, 1, offs2) + x).astype(out_ref.dtype)


def _conv_offsets(K, d):
    """Static (dh, dw) tap offsets for a 'same' conv with dilation d."""
    p = (K - 1) // 2 * d
    return tuple((kh * d - p, kw * d - p) for kh in range(K) for kw in range(K))


def _build_masks(H, W, C, offsets_per_conv):
    """(n_conv * K*K * C, H*W) f32 validity masks, tap-major, channel-bcast."""
    HW = H * W
    hh, ww = np.meshgrid(np.arange(H), np.arange(W), indexing="ij")
    hh = hh.reshape(HW)
    ww = ww.reshape(HW)
    blocks = []
    for offs in offsets_per_conv:
        for dh, dw in offs:
            valid = ((hh + dh >= 0) & (hh + dh < H)
                     & (ww + dw >= 0) & (ww + dw < W)).astype(np.float32)
            blocks.append(np.broadcast_to(valid[None, :], (C, HW)))
    return np.concatenate(blocks, axis=0)


def resnet_block_pallas(x_nchw, w1, b1, w2, b2, *, kernel_size, dilation,
                        batch_block=None, leaky_slope=0.0):
    """x_nchw: (N, C, H, W); w*: (Cout, Cin, K, K) PyTorch layout; b*: (C,).

    batch_block=None -> whole batch in ONE grid step (single-TC v5e/v6e).
    batch_block=1    -> batch-parallel grid (2-TC v7x variant)."""
    N, C, H, W = x_nchw.shape
    K = kernel_size
    d1, d2 = dilation
    HW = H * W

    nb = N if batch_block is None else batch_block
    assert N % nb == 0, "batch_block must divide N"
    G = N // nb

    offs1 = _conv_offsets(K, d1)
    offs2 = _conv_offsets(K, d2)
    # Precomputed edge masks (trace-time constants passed as a resident input).
    masks = jnp.asarray(_build_masks(H, W, C, (offs1, offs2)))  # (2*K*K*C, HW)

    # Glue: pure reshapes only, no transposes on activations.
    x = x_nchw.astype(jnp.float32).reshape(N, C, HW)
    # Weights: (Cout,Cin,K,K) -> (Cout, K*K*Cin), row order = (kh, kw, ci)
    # to match the im2col tap-major / channel-minor scratch layout.
    w1_mat = jnp.transpose(w1, (0, 2, 3, 1)).reshape(C, K * K * C).astype(jnp.float32)
    w2_mat = jnp.transpose(w2, (0, 2, 3, 1)).reshape(C, K * K * C).astype(jnp.float32)
    b1_2d = b1.reshape(C, 1).astype(jnp.float32)
    b2_2d = b2.reshape(C, 1).astype(jnp.float32)

    kernel = functools.partial(_resnet_block_kernel,
                               C=C, H=H, W=W, nb=nb,
                               offs1=offs1, offs2=offs2,
                               leaky_slope=leaky_slope)

    out = pl.pallas_call(
        kernel,
        out_shape=jax.ShapeDtypeStruct((N, C, HW), jnp.float32),
        grid_spec=pltpu.PrefetchScalarGridSpec(
            num_scalar_prefetch=0,
            grid=(G,),
            in_specs=[
                pl.BlockSpec((nb, C, HW), lambda g: (g, 0, 0)),          # x
                pl.BlockSpec((C, K * K * C), lambda g: (0, 0)),          # w1
                pl.BlockSpec((C, 1), lambda g: (0, 0)),                  # b1
                pl.BlockSpec((C, K * K * C), lambda g: (0, 0)),          # w2
                pl.BlockSpec((C, 1), lambda g: (0, 0)),                  # b2
                pl.BlockSpec((2 * K * K * C, HW), lambda g: (0, 0)),     # masks
            ],
            out_specs=pl.BlockSpec((nb, C, HW), lambda g: (g, 0, 0)),
            scratch_shapes=[pltpu.VMEM((K * K * C, HW), jnp.float32)],
        ),
        compiler_params=pltpu.CompilerParams(
            dimension_semantics=("parallel",)),
    )(x, w1_mat, b1_2d, w2_mat, b2_2d, masks)

    return out.reshape(N, C, H, W)


def _reference(x, w1, b1, w2, b2, *, kernel_size, dilation, leaky_slope=0.0):
    """Pure-JAX reference mirroring the PyTorch module (NCHW)."""
    K = kernel_size

    def conv(inp, w, b, d):
        p = (K - 1) // 2 * d
        y = lax.conv_general_dilated(
            inp, w, window_strides=(1, 1), padding=[(p, p), (p, p)],
            rhs_dilation=(d, d),
            dimension_numbers=('NCHW', 'OIHW', 'NCHW'))
        return y + b.reshape(1, -1, 1, 1)

    h = conv(x, w1, b1, dilation[0])
    h = jnp.maximum(h, leaky_slope * h)            # LeakyReLU(0.0)
    h = conv(h, w2, b2, dilation[1])
    return h + x


if __name__ == "__main__":
    # ResnetBlock(in_channels=8, kernel_size=3, dilation=(1, 2), bias=True)
    # applied to x of shape (2, 8, 16, 16).
    N, C, H, W = 2, 8, 16, 16
    K = 3
    dilation = (1, 2)

    key = jax.random.PRNGKey(0)
    kx, kw1, kb1, kw2, kb2 = jax.random.split(key, 5)

    x = jax.random.normal(kx, (N, C, H, W), dtype=jnp.float32)
    w1 = jax.random.normal(kw1, (C, C, K, K), dtype=jnp.float32) * 0.1
    b1 = jax.random.normal(kb1, (C,), dtype=jnp.float32) * 0.1
    w2 = jax.random.normal(kw2, (C, C, K, K), dtype=jnp.float32) * 0.1
    b2 = jax.random.normal(kb2, (C,), dtype=jnp.float32) * 0.1

    ref = jax.block_until_ready(
        _reference(x, w1, b1, w2, b2, kernel_size=K, dilation=dilation))

    # Default path: whole batch in a single grid step (v5e/v6e recommendation).
    out = jax.block_until_ready(
        resnet_block_pallas(x, w1, b1, w2, b2, kernel_size=K, dilation=dilation))
    assert out.shape == (N, C, H, W)
    assert jnp.allclose(out, ref, atol=1e-4, rtol=1e-4)

    # Batch-parallel grid variant (v7x 2-TC split) — exercised and validated.
    out1 = jax.block_until_ready(
        resnet_block_pallas(x, w1, b1, w2, b2, kernel_size=K, dilation=dilation,
                            batch_block=1))
    assert jnp.allclose(out1, ref, atol=1e-4, rtol=1e-4)

    print("KERNEL_OK")
</pallas_src>

<mosaic_0001>
module attributes {stable_mosaic.version = 11 : i64} {
  func.func @_resnet_block_kernel(%arg0: i32, %arg1: memref<2x8x256xf32, #tpu.memory_space<vmem>>, %arg2: memref<8x72xf32, #tpu.memory_space<vmem>>, %arg3: memref<8x1xf32, #tpu.memory_space<vmem>>, %arg4: memref<8x72xf32, #tpu.memory_space<vmem>>, %arg5: memref<8x1xf32, #tpu.memory_space<vmem>>, %arg6: memref<144x256xf32, #tpu.memory_space<vmem>>, %arg7: memref<2x8x256xf32, #tpu.memory_space<vmem>>, %arg8: memref<72x256xf32, #tpu.memory_space<vmem>>) attributes {dimension_semantics = [#tpu.dimension_semantics<parallel>], iteration_bounds = array<i64: 1>, scalar_prefetch = 0 : i64, scratch_operands = 1 : i64, tpu.core_type = #tpu.core_type<tc>, window_params = [{transform_indices = @transform_0, window_bounds = array<i64: 2, 8, 256>}, {pipeline_mode = #tpu.pipeline_mode<synchronous>, transform_indices = @transform_1, window_bounds = array<i64: 8, 72>}, {pipeline_mode = #tpu.pipeline_mode<synchronous>, transform_indices = @transform_2, window_bounds = array<i64: 8, 1>}, {pipeline_mode = #tpu.pipeline_mode<synchronous>, transform_indices = @transform_3, window_bounds = array<i64: 8, 72>}, {pipeline_mode = #tpu.pipeline_mode<synchronous>, transform_indices = @transform_4, window_bounds = array<i64: 8, 1>}, {pipeline_mode = #tpu.pipeline_mode<synchronous>, transform_indices = @transform_5, window_bounds = array<i64: 144, 256>}, {transform_indices = @transform_6, window_bounds = array<i64: 2, 8, 256>}]} {
    %c0 = arith.constant 0 : index
    %c0_0 = arith.constant 0 : index
    %0 = vector.load %arg2[%c0, %c0_0] : memref<8x72xf32, #tpu.memory_space<vmem>>, vector<8x72xf32>
    %c0_1 = arith.constant 0 : index
    %c0_2 = arith.constant 0 : index
    %1 = vector.load %arg4[%c0_1, %c0_2] : memref<8x72xf32, #tpu.memory_space<vmem>>, vector<8x72xf32>
    %c0_3 = arith.constant 0 : index
    %c0_4 = arith.constant 0 : index
    %2 = vector.load %arg3[%c0_3, %c0_4] : memref<8x1xf32, #tpu.memory_space<vmem>>, vector<8x1xf32>
    %c0_5 = arith.constant 0 : index
    %c0_6 = arith.constant 0 : index
    %3 = vector.load %arg5[%c0_5, %c0_6] : memref<8x1xf32, #tpu.memory_space<vmem>>, vector<8x1xf32>
    %c0_7 = arith.constant 0 : index
    %c0_8 = arith.constant 0 : index
    %c0_9 = arith.constant 0 : index
    %4 = vector.load %arg1[%c0_7, %c0_8, %c0_9] : memref<2x8x256xf32, #tpu.memory_space<vmem>>, vector<1x8x256xf32>
    %5 = vector.shape_cast %4 : vector<1x8x256xf32> to vector<8x256xf32>
    %c17_i32 = arith.constant 17 : i32
    %6 = tpu.dynamic_rotate %5 by %c17_i32 dim 1 : vector<8x256xf32>, i32 -> vector<8x256xf32>
    %c0_10 = arith.constant 0 : index
    %c0_11 = arith.constant 0 : index
    %7 = vector.load %arg6[%c0_10, %c0_11] : memref<144x256xf32, #tpu.memory_space<vmem>>, vector<8x256xf32>
    %8 = arith.mulf %6, %7 : vector<8x256xf32>
    %c0_12 = arith.constant 0 : index
    %c0_13 = arith.constant 0 : index
    %9 = vector.load %arg8[%c0_12, %c0_13] : memref<72x256xf32, #tpu.memory_space<vmem>>, vector<8x256xf32>
    tpu.vector_store %arg8[%c0_12, %c0_13], %8 {strides = array<i32>} : memref<72x256xf32, #tpu.memory_space<vmem>>, vector<8x256xf32>,
    %c16_i32 = arith.constant 16 : i32
    %10 = tpu.dynamic_rotate %5 by %c16_i32 dim 1 : vector<8x256xf32>, i32 -> vector<8x256xf32>
    %c8 = arith.constant 8 : index
    %c0_14 = arith.constant 0 : index
    %11 = vector.load %arg6[%c8, %c0_14] : memref<144x256xf32, #tpu.memory_space<vmem>>, vector<8x256xf32>
    %12 = arith.mulf %10, %11 : vector<8x256xf32>
    %c8_15 = arith.constant 8 : index
    %c0_16 = arith.constant 0 : index
    %13 = vector.load %arg8[%c8_15, %c0_16] : memref<72x256xf32, #tpu.memory_space<vmem>>, vector<8x256xf32>
    tpu.vector_store %arg8[%c8_15, %c0_16], %12 {strides = array<i32>} : memref<72x256xf32, #tpu.memory_space<vmem>>, vector<8x256xf32>,
    %c15_i32 = arith.constant 15 : i32
    %14 = tpu.dynamic_rotate %5 by %c15_i32 dim 1 : vector<8x256xf32>, i32 -> vector<8x256xf32>
    %c16 = arith.constant 16 : index
    %c0_17 = arith.constant 0 : index
    %15 = vector.load %arg6[%c16, %c0_17] : memref<144x256xf32, #tpu.memory_space<vmem>>, vector<8x256xf32>
    %16 = arith.mulf %14, %15 : vector<8x256xf32>
    %c16_18 = arith.constant 16 : index
    %c0_19 = arith.constant 0 : index
    %17 = vector.load %arg8[%c16_18, %c0_19] : memref<72x256xf32, #tpu.memory_space<vmem>>, vector<8x256xf32>
    tpu.vector_store %arg8[%c16_18, %c0_19], %16 {strides = array<i32>} : memref<72x256xf32, #tpu.memory_space<vmem>>, vector<8x256xf32>,
    %c1_i32 = arith.constant 1 : i32
    %18 = tpu.dynamic_rotate %5 by %c1_i32 dim 1 : vector<8x256xf32>, i32 -> vector<8x256xf32>
    %c24 = arith.constant 24 : index
    %c0_20 = arith.constant 0 : index
    %19 = vector.load %arg6[%c24, %c0_20] : memref<144x256xf32, #tpu.memory_space<vmem>>, vector<8x256xf32>
    %20 = arith.mulf %18, %19 : vector<8x256xf32>
    %c24_21 = arith.constant 24 : index
    %c0_22 = arith.constant 0 : index
    %21 = vector.load %arg8[%c24_21, %c0_22] : memref<72x256xf32, #tpu.memory_space<vmem>>, vector<8x256xf32>
    tpu.vector_store %arg8[%c24_21, %c0_22], %20 {strides = array<i32>} : memref<72x256xf32, #tpu.memory_space<vmem>>, vector<8x256xf32>,
    %c32 = arith.constant 32 : index
    %c0_23 = arith.constant 0 : index
    %22 = vector.load %arg8[%c32, %c0_23] : memref<72x256xf32, #tpu.memory_space<vmem>>, vector<8x256xf32>
    tpu.vector_store %arg8[%c32, %c0_23], %5 {strides = array<i32>} : memref<72x256xf32, #tpu.memory_space<vmem>>, vector<8x256xf32>,
    %c255_i32 = arith.constant 255 : i32
    %23 = tpu.dynamic_rotate %5 by %c255_i32 dim 1 : vector<8x256xf32>, i32 -> vector<8x256xf32>
    %c40 = arith.constant 40 : index
    %c0_24 = arith.constant 0 : index
    %24 = vector.load %arg6[%c40, %c0_24] : memref<144x256xf32, #tpu.memory_space<vmem>>, vector<8x256xf32>
    %25 = arith.mulf %23, %24 : vector<8x256xf32>
    %c40_25 = arith.constant 40 : index
    %c0_26 = arith.constant 0 : index
    %26 = vector.load %arg8[%c40_25, %c0_26] : memref<72x256xf32, #tpu.memory_space<vmem>>, vector<8x256xf32>
    tpu.vector_store %arg8[%c40_25, %c0_26], %25 {strides = array<i32>} : memref<72x256xf32, #tpu.memory_space<vmem>>, vector<8x256xf32>,
    %c241_i32 = arith.constant 241 : i32
    %27 = tpu.dynamic_rotate %5 by %c241_i32 dim 1 : vector<8x256xf32>, i32 -> vector<8x256xf32>
    %c48 = arith.constant 48 : index
    %c0_27 = arith.constant 0 : index
    %28 = vector.load %arg6[%c48, %c0_27] : memref<144x256xf32, #tpu.memory_space<vmem>>, vector<8x256xf32>
    %29 = arith.mulf %27, %28 : vector<8x256xf32>
    %c48_28 = arith.constant 48 : index
    %c0_29 = arith.constant 0 : index
    %30 = vector.load %arg8[%c48_28, %c0_29] : memref<72x256xf32, #tpu.memory_space<vmem>>, vector<8x256xf32>
    tpu.vector_store %arg8[%c48_28, %c0_29], %29 {strides = array<i32>} : memref<72x256xf32, #tpu.memory_space<vmem>>, vector<8x256xf32>,
    %c240_i32 = arith.constant 240 : i32
    %31 = tpu.dynamic_rotate %5 by %c240_i32 dim 1 : vector<8x256xf32>, i32 -> vector<8x256xf32>
    %c56 = arith.constant 56 : index
    %c0_30 = arith.constant 0 : index
    %32 = vector.load %arg6[%c56, %c0_30] : memref<144x256xf32, #tpu.memory_space<vmem>>, vector<8x256xf32>
    %33 = arith.mulf %31, %32 : vector<8x256xf32>
    %c56_31 = arith.constant 56 : index
    %c0_32 = arith.constant 0 : index
    %34 = vector.load %arg8[%c56_31, %c0_32] : memref<72x256xf32, #tpu.memory_space<vmem>>, vector<8x256xf32>
    tpu.vector_store %arg8[%c56_31, %c0_32], %33 {strides = array<i32>} : memref<72x256xf32, #tpu.memory_space<vmem>>, vector<8x256xf32>,
    %c239_i32 = arith.constant 239 : i32
    %35 = tpu.dynamic_rotate %5 by %c239_i32 dim 1 : vector<8x256xf32>, i32 -> vector<8x256xf32>
    %c64 = arith.constant 64 : index
    %c0_33 = arith.constant 0 : index
    %36 = vector.load %arg6[%c64, %c0_33] : memref<144x256xf32, #tpu.memory_space<vmem>>, vector<8x256xf32>
    %37 = arith.mulf %35, %36 : vector<8x256xf32>
    %c64_34 = arith.constant 64 : index
    %c0_35 = arith.constant 0 : index
    %38 = vector.load %arg8[%c64_34, %c0_35] : memref<72x256xf32, #tpu.memory_space<vmem>>, vector<8x256xf32>
    tpu.vector_store %arg8[%c64_34, %c0_35], %37 {strides = array<i32>} : memref<72x256xf32, #tpu.memory_space<vmem>>, vector<8x256xf32>,
    %c0_36 = arith.constant 0 : index
    %c0_37 = arith.constant 0 : index
    %39 = vector.load %arg8[%c0_36, %c0_37] : memref<72x256xf32, #tpu.memory_space<vmem>>, vector<72x256xf32>
    %cst = arith.constant dense<0.000000e+00> : vector<8x256xf32>
    %40 = tpu.matmul %0, %39, %cst {dimension_numbers = #tpu.dot_dimension_numbers<[1], [0], [0], [1], [0, 0, 1, 1], [], []>} : vector<8x72xf32>, vector<72x256xf32>, vector<8x256xf32> -> vector<8x256xf32>
    %41 = vector.broadcast %2 : vector<8x1xf32> to vector<8x256xf32>
    %42 = arith.addf %40, %41 : vector<8x256xf32>
    %cst_38 = arith.constant 0.000000e+00 : f32
    %43 = vector.broadcast %cst_38 : f32 to vector<8x256xf32>
    %44 = arith.mulf %43, %42 : vector<8x256xf32>
    %45 = arith.maximumf %42, %44 : vector<8x256xf32>
    %c34_i32 = arith.constant 34 : i32
    %46 = tpu.dynamic_rotate %45 by %c34_i32 dim 1 : vector<8x256xf32>, i32 -> vector<8x256xf32>
    %c72 = arith.constant 72 : index
    %c0_39 = arith.constant 0 : index
    %47 = vector.load %arg6[%c72, %c0_39] : memref<144x256xf32, #tpu.memory_space<vmem>>, vector<8x256xf32>
    %48 = arith.mulf %46, %47 : vector<8x256xf32>
    %c0_40 = arith.constant 0 : index
    %c0_41 = arith.constant 0 : index
    %49 = vector.load %arg8[%c0_40, %c0_41] : memref<72x256xf32, #tpu.memory_space<vmem>>, vector<8x256xf32>
    tpu.vector_store %arg8[%c0_40, %c0_41], %48 {strides = array<i32>} : memref<72x256xf32, #tpu.memory_space<vmem>>, vector<8x256xf32>,
    %c32_i32 = arith.constant 32 : i32
    %50 = tpu.dynamic_rotate %45 by %c32_i32 dim 1 : vector<8x256xf32>, i32 -> vector<8x256xf32>
    %c80 = arith.constant 80 : index
    %c0_42 = arith.constant 0 : index
    %51 = vector.load %arg6[%c80, %c0_42] : memref<144x256xf32, #tpu.memory_space<vmem>>, vector<8x256xf32>
    %52 = arith.mulf %50, %51 : vector<8x256xf32>
    %c8_43 = arith.constant 8 : index
    %c0_44 = arith.constant 0 : index
    %53 = vector.load %arg8[%c8_43, %c0_44] : memref<72x256xf32, #tpu.memory_space<vmem>>, vector<8x256xf32>
    tpu.vector_store %arg8[%c8_43, %c0_44], %52 {strides = array<i32>} : memref<72x256xf32, #tpu.memory_space<vmem>>, vector<8x256xf32>,
    %c30_i32 = arith.constant 30 : i32
    %54 = tpu.dynamic_rotate %45 by %c30_i32 dim 1 : vector<8x256xf32>, i32 -> vector<8x256xf32>
    %c88 = arith.constant 88 : index
    %c0_45 = arith.constant 0 : index
    %55 = vector.load %arg6[%c88, %c0_45] : memref<144x256xf32, #tpu.memory_space<vmem>>, vector<8x256xf32>
    %56 = arith.mulf %54, %55 : vector<8x256xf32>
    %c16_46 = arith.constant 16 : index
    %c0_47 = arith.constant 0 : index
    %57 = vector.load %arg8[%c16_46, %c0_47] : memref<72x256xf32, #tpu.memory_space<vmem>>, vector<8x256xf32>
    tpu.vector_store %arg8[%c16_46, %c0_47], %56 {strides = array<i32>} : memref<72x256xf32, #tpu.memory_space<vmem>>, vector<8x256xf32>,
    %c2_i32 = arith.constant 2 : i32
    %58 = tpu.dynamic_rotate %45 by %c2_i32 dim 1 : vector<8x256xf32>, i32 -> vector<8x256xf32>
    %c96 = arith.constant 96 : index
    %c0_48 = arith.constant 0 : index
    %59 = vector.load %arg6[%c96, %c0_48] : memref<144x256xf32, #tpu.memory_space<vmem>>, vector<8x256xf32>
    %60 = arith.mulf %58, %59 : vector<8x256xf32>
    %c24_49 = arith.constant 24 : index
    %c0_50 = arith.constant 0 : index
    %61 = vector.load %arg8[%c24_49, %c0_50] : memref<72x256xf32, #tpu.memory_space<vmem>>, vector<8x256xf32>
    tpu.vector_store %arg8[%c24_49, %c0_50], %60 {strides = array<i32>} : memref<72x256xf32, #tpu.memory_space<vmem>>, vector<8x256xf32>,
    %c32_51 = arith.constant 32 : index
    %c0_52 = arith.constant 0 : index
    %62 = vector.load %arg8[%c32_51, %c0_52] : memref<72x256xf32, #tpu.memory_space<vmem>>, vector<8x256xf32>
    tpu.vector_store %arg8[%c32_51, %c0_52], %45 {strides = array<i32>} : memref<72x256xf32, #tpu.memory_space<vmem>>, vector<8x256xf32>,
    %c254_i32 = arith.constant 254 : i32
    %63 = tpu.dynamic_rotate %45 by %c254_i32 dim 1 : vector<8x256xf32>, i32 -> vector<8x256xf32>
    %c112 = arith.constant 112 : index
    %c0_53 = arith.constant 0 : index
    %64 = vector.load %arg6[%c112, %c0_53] : memref<144x256xf32, #tpu.memory_space<vmem>>, vector<8x256xf32>
    %65 = arith.mulf %63, %64 : vector<8x256xf32>
    %c40_54 = arith.constant 40 : index
    %c0_55 = arith.constant 0 : index
    %66 = vector.load %arg8[%c40_54, %c0_55] : memref<72x256xf32, #tpu.memory_space<vmem>>, vector<8x256xf32>
    tpu.vector_store %arg8[%c40_54, %c0_55], %65 {strides = array<i32>} : memref<72x256xf32, #tpu.memory_space<vmem>>, vector<8x256xf32>,
    %c226_i32 = arith.constant 226 : i32
    %67 = tpu.dynamic_rotate %45 by %c226_i32 dim 1 : vector<8x256xf32>, i32 -> vector<8x256xf32>
    %c120 = arith.constant 120 : index
    %c0_56 = arith.constant 0 : index
    %68 = vector.load %arg6[%c120, %c0_56] : memref<144x256xf32, #tpu.memory_space<vmem>>, vector<8x256xf32>
    %69 = arith.mulf %67, %68 : vector<8x256xf32>
    %c48_57 = arith.constant 48 : index
    %c0_58 = arith.constant 0 : index
    %70 = vector.load %arg8[%c48_57, %c0_58] : memref<72x256xf32, #tpu.memory_space<vmem>>, vector<8x256xf32>
    tpu.vector_store %arg8[%c48_57, %c0_58], %69 {strides = array<i32>} : memref<72x256xf32, #tpu.memory_space<vmem>>, vector<8x256xf32>,
    %c224_i32 = arith.constant 224 : i32
    %71 = tpu.dynamic_rotate %45 by %c224_i32 dim 1 : vector<8x256xf32>, i32 -> vector<8x256xf32>
    %c128 = arith.constant 128 : index
    %c0_59 = arith.constant 0 : index
    %72 = vector.load %arg6[%c128, %c0_59] : memref<144x256xf32, #tpu.memory_space<vmem>>, vector<8x256xf32>
    %73 = arith.mulf %71, %72 : vector<8x256xf32>
    %c56_60 = arith.constant 56 : index
    %c0_61 = arith.constant 0 : index
    %74 = vector.load %arg8[%c56_60, %c0_61] : memref<72x256xf32, #tpu.memory_space<vmem>>, vector<8x256xf32>
    tpu.vector_store %arg8[%c56_60, %c0_61], %73 {strides = array<i32>} : memref<72x256xf32, #tpu.memory_space<vmem>>, vector<8x256xf32>,
    %c222_i32 = arith.constant 222 : i32
    %75 = tpu.dynamic_rotate %45 by %c222_i32 dim 1 : vector<8x256xf32>, i32 -> vector<8x256xf32>
    %c136 = arith.constant 136 : index
    %c0_62 = arith.constant 0 : index
    %76 = vector.load %arg6[%c136, %c0_62] : memref<144x256xf32, #tpu.memory_space<vmem>>, vector<8x256xf32>
    %77 = arith.mulf %75, %76 : vector<8x256xf32>
    %c64_63 = arith.constant 64 : index
    %c0_64 = arith.constant 0 : index
    %78 = vector.load %arg8[%c64_63, %c0_64] : memref<72x256xf32, #tpu.memory_space<vmem>>, vector<8x256xf32>
    tpu.vector_store %arg8[%c64_63, %c0_64], %77 {strides = array<i32>} : memref<72x256xf32, #tpu.memory_space<vmem>>, vector<8x256xf32>,
    %c0_65 = arith.constant 0 : index
    %c0_66 = arith.constant 0 : index
    %79 = vector.load %arg8[%c0_65, %c0_66] : memref<72x256xf32, #tpu.memory_space<vmem>>, vector<72x256xf32>
    %cst_67 = arith.constant dense<0.000000e+00> : vector<8x256xf32>
    %80 = tpu.matmul %1, %79, %cst_67 {dimension_numbers = #tpu.dot_dimension_numbers<[1], [0], [0], [1], [0, 0, 1, 1], [], []>} : vector<8x72xf32>, vector<72x256xf32>, vector<8x256xf32> -> vector<8x256xf32>
    %81 = vector.broadcast %3 : vector<8x1xf32> to vector<8x256xf32>
    %82 = arith.addf %80, %81 : vector<8x256xf32>
    %83 = arith.addf %82, %5 : vector<8x256xf32>
    %c0_68 = arith.constant 0 : index
    %c0_69 = arith.constant 0 : index
    %c0_70 = arith.constant 0 : index
    %84 = vector.load %arg7[%c0_68, %c0_69, %c0_70] : memref<2x8x256xf32, #tpu.memory_space<vmem>>, vector<1x8x256xf32>
    %85 = vector.shape_cast %84 : vector<1x8x256xf32> to vector<8x256xf32>
    %86 = vector.shape_cast %83 : vector<8x256xf32> to vector<1x8x256xf32>
    tpu.vector_store %arg7[%c0_68, %c0_69, %c0_70], %86 {strides = array<i32>} : memref<2x8x256xf32, #tpu.memory_space<vmem>>, vector<1x8x256xf32>,
    %c1 = arith.constant 1 : index
    %c0_71 = arith.constant 0 : index
    %c0_72 = arith.constant 0 : index
    %87 = vector.load %arg1[%c1, %c0_71, %c0_72] : memref<2x8x256xf32, #tpu.memory_space<vmem>>, vector<1x8x256xf32>
    %88 = vector.shape_cast %87 : vector<1x8x256xf32> to vector<8x256xf32>
    %c17_i32_73 = arith.constant 17 : i32
    %89 = tpu.dynamic_rotate %88 by %c17_i32_73 dim 1 : vector<8x256xf32>, i32 -> vector<8x256xf32>
    %c0_74 = arith.constant 0 : index
    %c0_75 = arith.constant 0 : index
    %90 = vector.load %arg6[%c0_74, %c0_75] : memref<144x256xf32, #tpu.memory_space<vmem>>, vector<8x256xf32>
    %91 = arith.mulf %89, %90 : vector<8x256xf32>
    %c0_76 = arith.constant 0 : index
    %c0_77 = arith.constant 0 : index
    %92 = vector.load %arg8[%c0_76, %c0_77] : memref<72x256xf32, #tpu.memory_space<vmem>>, vector<8x256xf32>
    tpu.vector_store %arg8[%c0_76, %c0_77], %91 {strides = array<i32>} : memref<72x256xf32, #tpu.memory_space<vmem>>, vector<8x256xf32>,
    %c16_i32_78 = arith.constant 16 : i32
    %93 = tpu.dynamic_rotate %88 by %c16_i32_78 dim 1 : vector<8x256xf32>, i32 -> vector<8x256xf32>
    %c8_79 = arith.constant 8 : index
    %c0_80 = arith.constant 0 : index
    %94 = vector.load %arg6[%c8_79, %c0_80] : memref<144x256xf32, #tpu.memory_space<vmem>>, vector<8x256xf32>
    %95 = arith.mulf %93, %94 : vector<8x256xf32>
    %c8_81 = arith.constant 8 : index
    %c0_82 = arith.constant 0 : index
    %96 = vector.load %arg8[%c8_81, %c0_82] : memref<72x256xf32, #tpu.memory_space<vmem>>, vector<8x256xf32>
    tpu.vector_store %arg8[%c8_81, %c0_82], %95 {strides = array<i32>} : memref<72x256xf32, #tpu.memory_space<vmem>>, vector<8x256xf32>,
    %c15_i32_83 = arith.constant 15 : i32
    %97 = tpu.dynamic_rotate %88 by %c15_i32_83 dim 1 : vector<8x256xf32>, i32 -> vector<8x256xf32>
    %c16_84 = arith.constant 16 : index
    %c0_85 = arith.constant 0 : index
    %98 = vector.load %arg6[%c16_84, %c0_85] : memref<144x256xf32, #tpu.memory_space<vmem>>, vector<8x256xf32>
    %99 = arith.mulf %97, %98 : vector<8x256xf32>
    %c16_86 = arith.constant 16 : index
    %c0_87 = arith.constant 0 : index
    %100 = vector.load %arg8[%c16_86, %c0_87] : memref<72x256xf32, #tpu.memory_space<vmem>>, vector<8x256xf32>
    tpu.vector_store %arg8[%c16_86, %c0_87], %99 {strides = array<i32>} : memref<72x256xf32, #tpu.memory_space<vmem>>, vector<8x256xf32>,
    %c1_i32_88 = arith.constant 1 : i32
    %101 = tpu.dynamic_rotate %88 by %c1_i32_88 dim 1 : vector<8x256xf32>, i32 -> vector<8x256xf32>
    %c24_89 = arith.constant 24 : index
    %c0_90 = arith.constant 0 : index
    %102 = vector.load %arg6[%c24_89, %c0_90] : memref<144x256xf32, #tpu.memory_space<vmem>>, vector<8x256xf32>
    %103 = arith.mulf %101, %102 : vector<8x256xf32>
    %c24_91 = arith.constant 24 : index
    %c0_92 = arith.constant 0 : index
    %104 = vector.load %arg8[%c24_91, %c0_92] : memref<72x256xf32, #tpu.memory_space<vmem>>, vector<8x256xf32>
    tpu.vector_store %arg8[%c24_91, %c0_92], %103 {strides = array<i32>} : memref<72x256xf32, #tpu.memory_space<vmem>>, vector<8x256xf32>,
    %c32_93 = arith.constant 32 : index
    %c0_94 = arith.constant 0 : index
    %105 = vector.load %arg8[%c32_93, %c0_94] : memref<72x256xf32, #tpu.memory_space<vmem>>, vector<8x256xf32>
    tpu.vector_store %arg8[%c32_93, %c0_94], %88 {strides = array<i32>} : memref<72x256xf32, #tpu.memory_space<vmem>>, vector<8x256xf32>,
    %c255_i32_95 = arith.constant 255 : i32
    %106 = tpu.dynamic_rotate %88 by %c255_i32_95 dim 1 : vector<8x256xf32>, i32 -> vector<8x256xf32>
    %c40_96 = arith.constant 40 : index
    %c0_97 = arith.constant 0 : index
    %107 = vector.load %arg6[%c40_96, %c0_97] : memref<144x256xf32, #tpu.memory_space<vmem>>, vector<8x256xf32>
    %108 = arith.mulf %106, %107 : vector<8x256xf32>
    %c40_98 = arith.constant 40 : index
    %c0_99 = arith.constant 0 : index
    %109 = vector.load %arg8[%c40_98, %c0_99] : memref<72x256xf32, #tpu.memory_space<vmem>>, vector<8x256xf32>
    tpu.vector_store %arg8[%c40_98, %c0_99], %108 {strides = array<i32>} : memref<72x256xf32, #tpu.memory_space<vmem>>, vector<8x256xf32>,
    %c241_i32_100 = arith.constant 241 : i32
    %110 = tpu.dynamic_rotate %88 by %c241_i32_100 dim 1 : vector<8x256xf32>, i32 -> vector<8x256xf32>
    %c48_101 = arith.constant 48 : index
    %c0_102 = arith.constant 0 : index
    %111 = vector.load %arg6[%c48_101, %c0_102] : memref<144x256xf32, #tpu.memory_space<vmem>>, vector<8x256xf32>
    %112 = arith.mulf %110, %111 : vector<8x256xf32>
    %c48_103 = arith.constant 48 : index
    %c0_104 = arith.constant 0 : index
    %113 = vector.load %arg8[%c48_103, %c0_104] : memref<72x256xf32, #tpu.memory_space<vmem>>, vector<8x256xf32>
    tpu.vector_store %arg8[%c48_103, %c0_104], %112 {strides = array<i32>} : memref<72x256xf32, #tpu.memory_space<vmem>>, vector<8x256xf32>,
    %c240_i32_105 = arith.constant 240 : i32
    %114 = tpu.dynamic_rotate %88 by %c240_i32_105 dim 1 : vector<8x256xf32>, i32 -> vector<8x256xf32>
    %c56_106 = arith.constant 56 : index
    %c0_107 = arith.constant 0 : index
    %115 = vector.load %arg6[%c56_106, %c0_107] : memref<144x256xf32, #tpu.memory_space<vmem>>, vector<8x256xf32>
    %116 = arith.mulf %114, %115 : vector<8x256xf32>
    %c56_108 = arith.constant 56 : index
    %c0_109 = arith.constant 0 : index
    %117 = vector.load %arg8[%c56_108, %c0_109] : memref<72x256xf32, #tpu.memory_space<vmem>>, vector<8x256xf32>
    tpu.vector_store %arg8[%c56_108, %c0_109], %116 {strides = array<i32>} : memref<72x256xf32, #tpu.memory_space<vmem>>, vector<8x256xf32>,
    %c239_i32_110 = arith.constant 239 : i32
    %118 = tpu.dynamic_rotate %88 by %c239_i32_110 dim 1 : vector<8x256xf32>, i32 -> vector<8x256xf32>
    %c64_111 = arith.constant 64 : index
    %c0_112 = arith.constant 0 : index
    %119 = vector.load %arg6[%c64_111, %c0_112] : memref<144x256xf32, #tpu.memory_space<vmem>>, vector<8x256xf32>
    %120 = arith.mulf %118, %119 : vector<8x256xf32>
    %c64_113 = arith.constant 64 : index
    %c0_114 = arith.constant 0 : index
    %121 = vector.load %arg8[%c64_113, %c0_114] : memref<72x256xf32, #tpu.memory_space<vmem>>, vector<8x256xf32>
    tpu.vector_store %arg8[%c64_113, %c0_114], %120 {strides = array<i32>} : memref<72x256xf32, #tpu.memory_space<vmem>>, vector<8x256xf32>,
    %c0_115 = arith.constant 0 : index
    %c0_116 = arith.constant 0 : index
    %122 = vector.load %arg8[%c0_115, %c0_116] : memref<72x256xf32, #tpu.memory_space<vmem>>, vector<72x256xf32>
    %cst_117 = arith.constant dense<0.000000e+00> : vector<8x256xf32>
    %123 = tpu.matmul %0, %122, %cst_117 {dimension_numbers = #tpu.dot_dimension_numbers<[1], [0], [0], [1], [0, 0, 1, 1], [], []>} : vector<8x72xf32>, vector<72x256xf32>, vector<8x256xf32> -> vector<8x256xf32>
    %124 = vector.broadcast %2 : vector<8x1xf32> to vector<8x256xf32>
    %125 = arith.addf %123, %124 : vector<8x256xf32>
    %cst_118 = arith.constant 0.000000e+00 : f32
    %126 = vector.broadcast %cst_118 : f32 to vector<8x256xf32>
    %127 = arith.mulf %126, %125 : vector<8x256xf32>
    %128 = arith.maximumf %125, %127 : vector<8x256xf32>
    %c34_i32_119 = arith.constant 34 : i32
    %129 = tpu.dynamic_rotate %128 by %c34_i32_119 dim 1 : vector<8x256xf32>, i32 -> vector<8x256xf32>
    %c72_120 = arith.constant 72 : index
    %c0_121 = arith.constant 0 : index
    %130 = vector.load %arg6[%c72_120, %c0_121] : memref<144x256xf32, #tpu.memory_space<vmem>>, vector<8x256xf32>
    %131 = arith.mulf %129, %130 : vector<8x256xf32>
    %c0_122 = arith.constant 0 : index
    %c0_123 = arith.constant 0 : index
    %132 = vector.load %arg8[%c0_122, %c0_123] : memref<72x256xf32, #tpu.memory_space<vmem>>, vector<8x256xf32>
    tpu.vector_store %arg8[%c0_122, %c0_123], %131 {strides = array<i32>} : memref<72x256xf32, #tpu.memory_space<vmem>>, vector<8x256xf32>,
    %c32_i32_124 = arith.constant 32 : i32
    %133 = tpu.dynamic_rotate %128 by %c32_i32_124 dim 1 : vector<8x256xf32>, i32 -> vector<8x256xf32>
    %c80_125 = arith.constant 80 : index
    %c0_126 = arith.constant 0 : index
    %134 = vector.load %arg6[%c80_125, %c0_126] : memref<144x256xf32, #tpu.memory_space<vmem>>, vector<8x256xf32>
    %135 = arith.mulf %133, %134 : vector<8x256xf32>
    %c8_127 = arith.constant 8 : index
    %c0_128 = arith.constant 0 : index
    %136 = vector.load %arg8[%c8_127, %c0_128] : memref<72x256xf32, #tpu.memory_space<vmem>>, vector<8x256xf32>
    tpu.vector_store %arg8[%c8_127, %c0_128], %135 {strides = array<i32>} : memref<72x256xf32, #tpu.memory_space<vmem>>, vector<8x256xf32>,
    %c30_i32_129 = arith.constant 30 : i32
    %137 = tpu.dynamic_rotate %128 by %c30_i32_129 dim 1 : vector<8x256xf32>, i32 -> vector<8x256xf32>
    %c88_130 = arith.constant 88 : index
    %c0_131 = arith.constant 0 : index
    %138 = vector.load %arg6[%c88_130, %c0_131] : memref<144x256xf32, #tpu.memory_space<vmem>>, vector<8x256xf32>
    %139 = arith.mulf %137, %138 : vector<8x256xf32>
    %c16_132 = arith.constant 16 : index
    %c0_133 = arith.constant 0 : index
    %140 = vector.load %arg8[%c16_132, %c0_133] : memref<72x256xf32, #tpu.memory_space<vmem>>, vector<8x256xf32>
    tpu.vector_store %arg8[%c16_132, %c0_133], %139 {strides = array<i32>} : memref<72x256xf32, #tpu.memory_space<vmem>>, vector<8x256xf32>,
    %c2_i32_134 = arith.constant 2 : i32
    %141 = tpu.dynamic_rotate %128 by %c2_i32_134 dim 1 : vector<8x256xf32>, i32 -> vector<8x256xf32>
    %c96_135 = arith.constant 96 : index
    %c0_136 = arith.constant 0 : index
    %142 = vector.load %arg6[%c96_135, %c0_136] : memref<144x256xf32, #tpu.memory_space<vmem>>, vector<8x256xf32>
    %143 = arith.mulf %141, %142 : vector<8x256xf32>
    %c24_137 = arith.constant 24 : index
    %c0_138 = arith.constant 0 : index
    %144 = vector.load %arg8[%c24_137, %c0_138] : memref<72x256xf32, #tpu.memory_space<vmem>>, vector<8x256xf32>
    tpu.vector_store %arg8[%c24_137, %c0_138], %143 {strides = array<i32>} : memref<72x256xf32, #tpu.memory_space<vmem>>, vector<8x256xf32>,
    %c32_139 = arith.constant 32 : index
    %c0_140 = arith.constant 0 : index
    %145 = vector.load %arg8[%c32_139, %c0_140] : memref<72x256xf32, #tpu.memory_space<vmem>>, vector<8x256xf32>
    tpu.vector_store %arg8[%c32_139, %c0_140], %128 {strides = array<i32>} : memref<72x256xf32, #tpu.memory_space<vmem>>, vector<8x256xf32>,
    %c254_i32_141 = arith.constant 254 : i32
    %146 = tpu.dynamic_rotate %128 by %c254_i32_141 dim 1 : vector<8x256xf32>, i32 -> vector<8x256xf32>
    %c112_142 = arith.constant 112 : index
    %c0_143 = arith.constant 0 : index
    %147 = vector.load %arg6[%c112_142, %c0_143] : memref<144x256xf32, #tpu.memory_space<vmem>>, vector<8x256xf32>
    %148 = arith.mulf %146, %147 : vector<8x256xf32>
    %c40_144 = arith.constant 40 : index
    %c0_145 = arith.constant 0 : index
    %149 = vector.load %arg8[%c40_144, %c0_145] : memref<72x256xf32, #tpu.memory_space<vmem>>, vector<8x256xf32>
    tpu.vector_store %arg8[%c40_144, %c0_145], %148 {strides = array<i32>} : memref<72x256xf32, #tpu.memory_space<vmem>>, vector<8x256xf32>,
    %c226_i32_146 = arith.constant 226 : i32
    %150 = tpu.dynamic_rotate %128 by %c226_i32_146 dim 1 : vector<8x256xf32>, i32 -> vector<8x256xf32>
    %c120_147 = arith.constant 120 : index
    %c0_148 = arith.constant 0 : index
    %151 = vector.load %arg6[%c120_147, %c0_148] : memref<144x256xf32, #tpu.memory_space<vmem>>, vector<8x256xf32>
    %152 = arith.mulf %150, %151 : vector<8x256xf32>
    %c48_149 = arith.constant 48 : index
    %c0_150 = arith.constant 0 : index
    %153 = vector.load %arg8[%c48_149, %c0_150] : memref<72x256xf32, #tpu.memory_space<vmem>>, vector<8x256xf32>
    tpu.vector_store %arg8[%c48_149, %c0_150], %152 {strides = array<i32>} : memref<72x256xf32, #tpu.memory_space<vmem>>, vector<8x256xf32>,
    %c224_i32_151 = arith.constant 224 : i32
    %154 = tpu.dynamic_rotate %128 by %c224_i32_151 dim 1 : vector<8x256xf32>, i32 -> vector<8x256xf32>
    %c128_152 = arith.constant 128 : index
    %c0_153 = arith.constant 0 : index
    %155 = vector.load %arg6[%c128_152, %c0_153] : memref<144x256xf32, #tpu.memory_space<vmem>>, vector<8x256xf32>
    %156 = arith.mulf %154, %155 : vector<8x256xf32>
    %c56_154 = arith.constant 56 : index
    %c0_155 = arith.constant 0 : index
    %157 = vector.load %arg8[%c56_154, %c0_155] : memref<72x256xf32, #tpu.memory_space<vmem>>, vector<8x256xf32>
    tpu.vector_store %arg8[%c56_154, %c0_155], %156 {strides = array<i32>} : memref<72x256xf32, #tpu.memory_space<vmem>>, vector<8x256xf32>,
    %c222_i32_156 = arith.constant 222 : i32
    %158 = tpu.dynamic_rotate %128 by %c222_i32_156 dim 1 : vector<8x256xf32>, i32 -> vector<8x256xf32>
    %c136_157 = arith.constant 136 : index
    %c0_158 = arith.constant 0 : index
    %159 = vector.load %arg6[%c136_157, %c0_158] : memref<144x256xf32, #tpu.memory_space<vmem>>, vector<8x256xf32>
    %160 = arith.mulf %158, %159 : vector<8x256xf32>
    %c64_159 = arith.constant 64 : index
    %c0_160 = arith.constant 0 : index
    %161 = vector.load %arg8[%c64_159, %c0_160] : memref<72x256xf32, #tpu.memory_space<vmem>>, vector<8x256xf32>
    tpu.vector_store %arg8[%c64_159, %c0_160], %160 {strides = array<i32>} : memref<72x256xf32, #tpu.memory_space<vmem>>, vector<8x256xf32>,
    %c0_161 = arith.constant 0 : index
    %c0_162 = arith.constant 0 : index
    %162 = vector.load %arg8[%c0_161, %c0_162] : memref<72x256xf32, #tpu.memory_space<vmem>>, vector<72x256xf32>
    %cst_163 = arith.constant dense<0.000000e+00> : vector<8x256xf32>
    %163 = tpu.matmul %1, %162, %cst_163 {dimension_numbers = #tpu.dot_dimension_numbers<[1], [0], [0], [1], [0, 0, 1, 1], [], []>} : vector<8x72xf32>, vector<72x256xf32>, vector<8x256xf32> -> vector<8x256xf32>
    %164 = vector.broadcast %3 : vector<8x1xf32> to vector<8x256xf32>
    %165 = arith.addf %163, %164 : vector<8x256xf32>
    %166 = arith.addf %165, %88 : vector<8x256xf32>
    %c1_164 = arith.constant 1 : index
    %c0_165 = arith.constant 0 : index
    %c0_166 = arith.constant 0 : index
    %167 = vector.load %arg7[%c1_164, %c0_165, %c0_166] : memref<2x8x256xf32, #tpu.memory_space<vmem>>, vector<1x8x256xf32>
    %168 = vector.shape_cast %167 : vector<1x8x256xf32> to vector<8x256xf32>
    %169 = vector.shape_cast %166 : vector<8x256xf32> to vector<1x8x256xf32>
    tpu.vector_store %arg7[%c1_164, %c0_165, %c0_166], %169 {strides = array<i32>} : memref<2x8x256xf32, #tpu.memory_space<vmem>>, vector<1x8x256xf32>,
    return
  }
  func.func @transform_0(%arg0: i32) -> (i32, i32, i32) {
    %c0_i32 = arith.constant 0 : i32
    %c0_i32_0 = arith.constant 0 : i32
    %c0_i32_1 = arith.constant 0 : i32
    return %arg0, %c0_i32, %c0_i32_0 : i32, i32, i32
  }
  func.func @transform_1(%arg0: i32) -> (i32, i32) {
    %c0_i32 = arith.constant 0 : i32
    %c0_i32_0 = arith.constant 0 : i32
    %c0_i32_1 = arith.constant 0 : i32
    return %c0_i32, %c0_i32_0 : i32, i32
  }
  func.func @transform_2(%arg0: i32) -> (i32, i32) {
    %c0_i32 = arith.constant 0 : i32
    %c0_i32_0 = arith.constant 0 : i32
    %c0_i32_1 = arith.constant 0 : i32
    return %c0_i32, %c0_i32_0 : i32, i32
  }
  func.func @transform_3(%arg0: i32) -> (i32, i32) {
    %c0_i32 = arith.constant 0 : i32
    %c0_i32_0 = arith.constant 0 : i32
    %c0_i32_1 = arith.constant 0 : i32
    return %c0_i32, %c0_i32_0 : i32, i32
  }
  func.func @transform_4(%arg0: i32) -> (i32, i32) {
    %c0_i32 = arith.constant 0 : i32
    %c0_i32_0 = arith.constant 0 : i32
    %c0_i32_1 = arith.constant 0 : i32
    return %c0_i32, %c0_i32_0 : i32, i32
  }
  func.func @transform_5(%arg0: i32) -> (i32, i32) {
    %c0_i32 = arith.constant 0 : i32
    %c0_i32_0 = arith.constant 0 : i32
    %c0_i32_1 = arith.constant 0 : i32
    return %c0_i32, %c0_i32_0 : i32, i32
  }
  func.func @transform_6(%arg0: i32) -> (i32, i32, i32) {
    %c0_i32 = arith.constant 0 : i32
    %c0_i32_0 = arith.constant 0 : i32
    %c0_i32_1 = arith.constant 0 : i32
    return %arg0, %c0_i32, %c0_i32_0 : i32, i32, i32
  }
}

</mosaic_0001>

<llo_original>
// kernel: tpu_custom_call.1
$region0: #{tpu_custom_call.1}
  #allocation0 [shape = 'u32[]', space=smem, size = 0x4, offset = 0x4, fixed_abs, tag = 'smem constant byte address 0x4 - core index']
  #allocation1 [shape = 'u32[144,128]{1,0:T(1,128)}', space=vmem, size = 0x12000, scoped, tag = 'internal scratch']
  #allocation2 [shape = 'f32[72,256]{1,0:T(8,128)}', space=vmem, size = 0x12000, scoped, tag = 'scratch operand']
  %s0 = inlined_call_operand.hbm [shape: f32[2,8,256], index: 0, kind: input, shape index: {}]
  %s1 = inlined_call_operand.vmem [shape: f32[8,72], index: 1, kind: input, shape index: {}]
  %s2 = inlined_call_operand.vmem [shape: f32[8,1], index: 2, kind: input, shape index: {}]
  %s3 = inlined_call_operand.vmem [shape: f32[8,72], index: 3, kind: input, shape index: {}]
  %s4 = inlined_call_operand.vmem [shape: f32[8,1], index: 4, kind: input, shape index: {}]
  %s5 = inlined_call_operand.hbm [shape: f32[144,256], index: 5, kind: input, shape index: {}]
  %s6 = inlined_call_operand.hbm [shape: f32[2,8,256], index: 6, kind: output, shape index: {}]
  %s7 = sld [smem:[#allocation0]]
  $region42: #{tpu_custom_call.1} parent=0
    _
  %s9 = ssub.s32 1, %s7
  %s10 = scalar_select 0, %s9, %s7
  $region1: #{tpu_custom_call.1} parent=0
    #allocation3 [shape = 'u8[16384]{0}', space=vmem, size = 0x4000, scoped, tag = 'input window, operand 0, single buffered']
    #allocation4 [shape = 's32[1]{0}', space=sflag, size = 0x4, scoped, tag = 'scoped memory for tpu_custom_call.1']
    #allocation5 [shape = 's32[1]{0}', space=sflag, size = 0x4, scoped, tag = 'scoped memory for tpu_custom_call.1']
    #allocation6 [shape = 'u8[147456]{0}', space=vmem, size = 0x24000, scoped, tag = 'input window, operand 5, single buffered']
    #allocation7 [shape = 's32[1]{0}', space=sflag, size = 0x4, scoped, tag = 'scoped memory for tpu_custom_call.1']
    #allocation8 [shape = 'u8[16384]{0}', space=vmem, size = 0x4000, scoped, tag = 'output window, operand 0, single buffered']
    %11 = vsyncpa [#allocation4], 0
    %12 = vsyncpa [#allocation7], 0
    %13 = vsyncpa [#allocation5], 0
    // Predicated region
    $region2: #{tpu_custom_call.1} parent=1 // pred_check
      _
    $region3: #{tpu_custom_call.1} parent=1 // pred_check_branch
      %15 = sbr.rel (0) target = $region5
    $region4: #{tpu_custom_call.1} parent=1 // pred_region
      %s17 = ssub.s32 512, 512
      %18 = vsyncadd [#allocation4], %s17
      %s19 = sshll.u32 [#allocation3], 4
      %s20 = int_to_ptr.vmem [resolvable:$true] %s19
      %25 = dma.hbm_to_vmem [thread:$0]  %s0, 512, %s20, [#allocation4], 256, 256, 16
    $region5: #{tpu_custom_call.1} parent=1 // pred_fallthru
      _
    // Predicated region
    $region6: #{tpu_custom_call.1} parent=1 // pred_check
      _
    $region7: #{tpu_custom_call.1} parent=1 // pred_check_branch
      %27 = sbr.rel (0) target = $region9
    $region8: #{tpu_custom_call.1} parent=1 // pred_region
      _
    $region9: #{tpu_custom_call.1} parent=1 // pred_fallthru
      _
    // Predicated region
    $region10: #{tpu_custom_call.1} parent=1 // pred_check
      _
    $region11: #{tpu_custom_call.1} parent=1 // pred_check_branch
      %29 = sbr.rel (0) target = $region13
    $region12: #{tpu_custom_call.1} parent=1 // pred_region
      _
    $region13: #{tpu_custom_call.1} parent=1 // pred_fallthru
      _
    // Predicated region
    $region14: #{tpu_custom_call.1} parent=1 // pred_check
      _
    $region15: #{tpu_custom_call.1} parent=1 // pred_check_branch
      %31 = sbr.rel (0) target = $region17
    $region16: #{tpu_custom_call.1} parent=1 // pred_region
      _
    $region17: #{tpu_custom_call.1} parent=1 // pred_fallthru
      _
    // Predicated region
    $region18: #{tpu_custom_call.1} parent=1 // pred_check
      _
    $region19: #{tpu_custom_call.1} parent=1 // pred_check_branch
      %33 = sbr.rel (0) target = $region21
    $region20: #{tpu_custom_call.1} parent=1 // pred_region
      _
    $region21: #{tpu_custom_call.1} parent=1 // pred_fallthru
      _
    // Predicated region
    $region22: #{tpu_custom_call.1} parent=1 // pred_check
      _
    $region23: #{tpu_custom_call.1} parent=1 // pred_check_branch
      %35 = sbr.rel (0) target = $region25
    $region24: #{tpu_custom_call.1} parent=1 // pred_region
      %s37 = ssub.s32 4608, 4608
      %38 = vsyncadd [#allocation7], %s37
      %s39 = sshll.u32 [#allocation6], 4
      %s40 = int_to_ptr.vmem [resolvable:$true] %s39
      %45 = dma.hbm_to_vmem [thread:$0]  %s5, 4608, %s40, [#allocation7], 256, 256, 16
    $region25: #{tpu_custom_call.1} parent=1 // pred_fallthru
      _
    // Predicated region
    $region26: #{tpu_custom_call.1} parent=1 // pred_check
      _
    $region27: #{tpu_custom_call.1} parent=1 // pred_check_branch
      %47 = sbr.rel (0) target = $region29
    $region28: #{tpu_custom_call.1} parent=1 // pred_region
      %48 = dma.done [#allocation4], 512
    $region29: #{tpu_custom_call.1} parent=1 // pred_fallthru
      _
    // Predicated region
    $region30: #{tpu_custom_call.1} parent=1 // pred_check
      _
    $region31: #{tpu_custom_call.1} parent=1 // pred_check_branch
      %50 = sbr.rel (0) target = $region33
    $region32: #{tpu_custom_call.1} parent=1 // pred_region
      %51 = dma.done [#allocation7], 4608
    $region33: #{tpu_custom_call.1} parent=1 // pred_fallthru
      _
    %v52 = vld [vmem:[%s1] sm:$0xff]
    %v53 = vld [vmem:[%s3] sm:$0xff]
    %v54 = vld [vmem:[%s2] sm:$0xff]
    %v55 = vld [vmem:[%s4] sm:$0xff]
    %v56 = vld [vmem:[#allocation3] sm:$0xff]
    %v57 = vld [vmem:[#allocation3 + $0x8] sm:$0xff]
    %58 = vrot.lane.b32.xlu0 %v56, 17
    %v59 = vpop.permute.xlu0 %58
    %60 = vrot.lane.b32.xlu0 %v57, 17
    %v61 = vpop.permute.xlu0 %60
    %v62 = vlaneseq
    %v63 = vand.u32 %v62, 127
    %vm64 = vcmp.lt.s32.totalorder %v63, 17
    %v65 = vsel %vm64, %v59, %v61
    %v66 = vsel %vm64, %v61, %v59
    %v67 = vld [vmem:[#allocation6] sm:$0xff]
    %v68 = vld [vmem:[#allocation6 + $0x8] sm:$0xff]
    %v69 = vmul.f32 %v66, %v67
    %v70 = vmul.f32 %v65, %v68
    %71 = vst [vmem:[#allocation2] sm:$0xff] %v69
    %72 = vst [vmem:[#allocation2 + $0x8] sm:$0xff] %v70
    %73 = vrot.lane.b32.xlu0 %v56, 16
    %v74 = vpop.permute.xlu0 %73
    %75 = vrot.lane.b32.xlu0 %v57, 16
    %v76 = vpop.permute.xlu0 %75
    %vm77 = vcmp.lt.s32.totalorder %v63, 16
    %v78 = vsel %vm77, %v74, %v76
    %v79 = vsel %vm77, %v76, %v74
    %v80 = vld [vmem:[#allocation6 + $0x10] sm:$0xff]
    %v81 = vld [vmem:[#allocation6 + $0x18] sm:$0xff]
    %v82 = vmul.f32 %v79, %v80
    %v83 = vmul.f32 %v78, %v81
    %84 = vst [vmem:[#allocation2 + $0x10] sm:$0xff] %v82
    %85 = vst [vmem:[#allocation2 + $0x18] sm:$0xff] %v83
    %86 = vrot.lane.b32.xlu0 %v56, 15
    %v87 = vpop.permute.xlu0 %86
    %88 = vrot.lane.b32.xlu0 %v57, 15
    %v89 = vpop.permute.xlu0 %88
    %vm90 = vcmp.lt.s32.totalorder %v63, 15
    %v91 = vsel %vm90, %v87, %v89
    %v92 = vsel %vm90, %v89, %v87
    %v93 = vld [vmem:[#allocation6 + $0x20] sm:$0xff]
    %v94 = vld [vmem:[#allocation6 + $0x28] sm:$0xff]
    %v95 = vmul.f32 %v92, %v93
    %v96 = vmul.f32 %v91, %v94
    %97 = vst [vmem:[#allocation2 + $0x20] sm:$0xff] %v95
    %98 = vst [vmem:[#allocation2 + $0x28] sm:$0xff] %v96
    %99 = vrot.lane.b32.xlu0 %v56, 1
    %v100 = vpop.permute.xlu0 %99
    %101 = vrot.lane.b32.xlu0 %v57, 1
    %v102 = vpop.permute.xlu0 %101
    %vm103 = vcmp.lt.s32.totalorder %v63, 1
    %v104 = vsel %vm103, %v100, %v102
    %v105 = vsel %vm103, %v102, %v100
    %v106 = vld [vmem:[#allocation6 + $0x30] sm:$0xff]
    %v107 = vld [vmem:[#allocation6 + $0x38] sm:$0xff]
    %v108 = vmul.f32 %v105, %v106
    %v109 = vmul.f32 %v104, %v107
    %110 = vst [vmem:[#allocation2 + $0x30] sm:$0xff] %v108
    %111 = vst [vmem:[#allocation2 + $0x38] sm:$0xff] %v109
    %112 = vst [vmem:[#allocation2 + $0x40] sm:$0xff] %v56
    %113 = vst [vmem:[#allocation2 + $0x48] sm:$0xff] %v57
    %114 = vrot.lane.b32.xlu0 %v56, 127
    %v115 = vpop.permute.xlu0 %114
    %116 = vrot.lane.b32.xlu0 %v57, 127
    %v117 = vpop.permute.xlu0 %116
    %vm118 = vcmp.lt.s32.totalorder %v63, 127
    %v119 = vsel %vm118, %v115, %v117
    %v120 = vsel %vm118, %v117, %v115
    %v121 = vld [vmem:[#allocation6 + $0x50] sm:$0xff]
    %v122 = vld [vmem:[#allocation6 + $0x58] sm:$0xff]
    %v123 = vmul.f32 %v119, %v121
    %v124 = vmul.f32 %v120, %v122
    %125 = vst [vmem:[#allocation2 + $0x50] sm:$0xff] %v123
    %126 = vst [vmem:[#allocation2 + $0x58] sm:$0xff] %v124
    %127 = vrot.lane.b32.xlu0 %v56, 113
    %v128 = vpop.permute.xlu0 %127
    %129 = vrot.lane.b32.xlu0 %v57, 113
    %v130 = vpop.permute.xlu0 %129
    %vm131 = vcmp.lt.s32.totalorder %v63, 113
    %v132 = vsel %vm131, %v128, %v130
    %v133 = vsel %vm131, %v130, %v128
    %v134 = vld [vmem:[#allocation6 + $0x60] sm:$0xff]
    %v135 = vld [vmem:[#allocation6 + $0x68] sm:$0xff]
    %v136 = vmul.f32 %v132, %v134
    %v137 = vmul.f32 %v133, %v135
    %138 = vst [vmem:[#allocation2 + $0x60] sm:$0xff] %v136
    %139 = vst [vmem:[#allocation2 + $0x68] sm:$0xff] %v137
    %140 = vrot.lane.b32.xlu0 %v56, 112
    %v141 = vpop.permute.xlu0 %140
    %142 = vrot.lane.b32.xlu0 %v57, 112
    %v143 = vpop.permute.xlu0 %142
    %vm144 = vcmp.lt.s32.totalorder %v63, 112
    %v145 = vsel %vm144, %v141, %v143
    %v146 = vsel %vm144, %v143, %v141
    %v147 = vld [vmem:[#allocation6 + $0x70] sm:$0xff]
    %v148 = vld [vmem:[#allocation6 + $0x78] sm:$0xff]
    %v149 = vmul.f32 %v145, %v147
    %v150 = vmul.f32 %v146, %v148
    %151 = vst [vmem:[#allocation2 + $0x70] sm:$0xff] %v149
    %152 = vst [vmem:[#allocation2 + $0x78] sm:$0xff] %v150
    %153 = vrot.lane.b32.xlu0 %v56, 111
    %v154 = vpop.permute.xlu0 %153
    %155 = vrot.lane.b32.xlu0 %v57, 111
    %v156 = vpop.permute.xlu0 %155
    %vm157 = vcmp.lt.s32.totalorder %v63, 111
    %v158 = vsel %vm157, %v154, %v156
    %v159 = vsel %vm157, %v156, %v154
    %v160 = vld [vmem:[#allocation6 + $0x80] sm:$0xff]
    %v161 = vld [vmem:[#allocation6 + $0x88] sm:$0xff]
    %v162 = vmul.f32 %v158, %v160
    %v163 = vmul.f32 %v159, %v161
    %164 = vst [vmem:[#allocation2 + $0x80] sm:$0xff] %v162
    %165 = vst [vmem:[#allocation2 + $0x88] sm:$0xff] %v163
    %v166 = vld [vmem:[#allocation2] sm:$0xff]
    %v167 = vld [vmem:[#allocation2 + $0x8] sm:$0xff]
    %v168 = vld [vmem:[#allocation2 + $0x10] sm:$0xff]
    %v169 = vld [vmem:[#allocation2 + $0x18] sm:$0xff]
    %v170 = vld [vmem:[#allocation2 + $0x20] sm:$0xff]
    %v171 = vld [vmem:[#allocation2 + $0x28] sm:$0xff]
    %v172 = vld [vmem:[#allocation2 + $0x30] sm:$0xff]
    %v173 = vld [vmem:[#allocation2 + $0x38] sm:$0xff]
    %v174 = vld [vmem:[#allocation2 + $0x40] sm:$0xff]
    %v175 = vld [vmem:[#allocation2 + $0x48] sm:$0xff]
    %v176 = vld [vmem:[#allocation2 + $0x50] sm:$0xff]
    %v177 = vld [vmem:[#allocation2 + $0x58] sm:$0xff]
    %v178 = vld [vmem:[#allocation2 + $0x60] sm:$0xff]
    %v179 = vld [vmem:[#allocation2 + $0x68] sm:$0xff]
    %v180 = vld [vmem:[#allocation2 + $0x70] sm:$0xff]
    %v181 = vld [vmem:[#allocation2 + $0x78] sm:$0xff]
    %v182 = vld [vmem:[#allocation2 + $0x80] sm:$0xff]
    %v183 = vld [vmem:[#allocation2 + $0x88] sm:$0xff]
    %185 = vset.pattern.permute.xlu0 0
    %186 = vperm.xlu0 %185, %v54
    %v187 = vpop.permute.xlu0 %186
    %vm189 = vcmask 588800
    %v191 = vsel %vm189, %v52, 0
    %193 = vmatprep.subr.mxu0 %v167
    %194 = vmatpush1.msra.mxu0 %v166
    %195 = vmatprep.subr.mxu0 %v169
    %196 = vmatpush1.msra.mxu0 %v168
    %197 = vmatprep.subr.mxu0 %v171
    %198 = vmatpush1.msra.mxu0 %v170
    %199 = vmatprep.subr.mxu0 %v173
    %200 = vmatpush1.msra.mxu0 %v172
    %201 = vmatprep.subr.mxu0 %v175
    %202 = vmatpush1.msra.mxu0 %v174
    %203 = vmatprep.subr.mxu0 %v177
    %204 = vmatpush1.msra.mxu0 %v176
    %205 = vmatprep.subr.mxu0 %v179
    %206 = vmatpush1.msra.mxu0 %v178
    %207 = vmatprep.subr.mxu0 %v181
    %208 = vmatpush1.msra.mxu0 %v180
    %209 = vmatprep.subr.mxu0 %v183
    %210 = vmatpush1.msra.mxu0 %v182
    %211 = vmatprep.subr.mxu0 0.0
    %212 = vmatpush1.msra.mxu0 0.0
    %213 = vmatprep.subr.mxu0 0.0
    %214 = vmatpush1.msra.mxu0 0.0
    %215 = vmatprep.subr.mxu0 0.0
    %216 = vmatpush1.msra.mxu0 0.0
    %217 = vmatprep.subr.mxu0 0.0
    %218 = vmatpush1.msra.mxu0 0.0
    %219 = vmatprep.subr.mxu0 0.0
    %220 = vmatpush1.msra.mxu0 0.0
    %221 = vmatprep.subr.mxu0 0.0
    %222 = vmatpush1.msra.mxu0 0.0
    %223 = vmatprep.subr.mxu0 0.0
    %224 = vmatpush1.msra.mxu0 0.0
    %225 = vmatprep.subr.mxu0 0.0
    %226 = vmatpush1.msra.mxu0 0.0
    %227 = vmatprep.subr.mxu0 0.0
    %228 = vmatpush1.msra.mxu0 0.0
    %229 = vmatprep.subr.mxu0 0.0
    %230 = vmatpush1.msra.mxu0 0.0
    %231 = vmatprep.subr.mxu0 0.0
    %232 = vmatpush1.msra.mxu0 0.0
    %233 = vmatprep.subr.mxu0 0.0
    %234 = vmatpush1.msra.mxu0 0.0
    %235 = vmatprep.subr.mxu0 0.0
    %236 = vmatpush1.msra.mxu0 0.0
    %237 = vmatprep.subr.mxu0 0.0
    %238 = vmatpush1.msra.mxu0 0.0
    %239 = vmatprep.subr.mxu0 0.0
    %240 = vmatpush1.msra.mxu0 0.0
    %241 = vmatprep.subr.mxu0 0.0
    %242 = vmatpush1.msra.mxu0 0.0
    %243 = vmatprep.subr.mxu0 0.0
    %244 = vmatpush1.msra.mxu0 0.0
    %245 = vmatprep.subr.mxu0 0.0
    %246 = vmatpush1.msra.mxu0 0.0
    %247 = vmatprep.subr.mxu0 0.0
    %248 = vmatpush1.msra.mxu0 0.0
    %249 = vmatprep.subr.mxu0 0.0
    %250 = vmatpush1.msra.mxu0 0.0
    %251 = vmatprep.subr.mxu0 0.0
    %252 = vmatpush1.msra.mxu0 0.0
    %253 = vmatprep.subr.mxu0 0.0
    %254 = vmatpush1.msra.mxu0 0.0
    %255 = vmatprep.subr.mxu0 0.0
    %256 = vmatpush1.msra.mxu0 0.0
    %257 = vmatprep.mubr.f32.mxu0 0.0
    %258 = vmatmul.mubr.f32.gmra.mrb[0].mxu0 %v191
    %v259 = vpop.f32.mrb[0].mxu0
    %v260 = vadd.f32 %v187, %v259
    %v261 = vpop.f32.mrb[0].mxu0
    %v262 = vadd.f32 %v187, %v261
    %263 = vdwg.mxu0
    %v264 = vmul.f32 %v260, 0.0
    %v265 = vmul.f32 %v262, 0.0
    %v266 = vmax.f32 %v260, %v264
    %v267 = vmax.f32 %v262, %v265
    %268 = vrot.lane.b32.xlu0 %v266, 34
    %v269 = vpop.permute.xlu0 %268
    %270 = vrot.lane.b32.xlu0 %v267, 34
    %v271 = vpop.permute.xlu0 %270
    %vm272 = vcmp.lt.s32.totalorder %v63, 34
    %v273 = vsel %vm272, %v269, %v271
    %v274 = vsel %vm272, %v271, %v269
    %v275 = vld [vmem:[#allocation6 + $0x90] sm:$0xff]
    %v276 = vld [vmem:[#allocation6 + $0x98] sm:$0xff]
    %v277 = vmul.f32 %v274, %v275
    %v278 = vmul.f32 %v273, %v276
    %279 = vst [vmem:[#allocation2] sm:$0xff] %v277
    %280 = vst [vmem:[#allocation2 + $0x8] sm:$0xff] %v278
    %281 = vrot.lane.b32.xlu0 %v266, 32
    %v282 = vpop.permute.xlu0 %281
    %283 = vrot.lane.b32.xlu0 %v267, 32
    %v284 = vpop.permute.xlu0 %283
    %vm285 = vcmp.lt.s32.totalorder %v63, 32
    %v286 = vsel %vm285, %v282, %v284
    %v287 = vsel %vm285, %v284, %v282
    %v288 = vld [vmem:[#allocation6 + $0xa0] sm:$0xff]
    %v289 = vld [vmem:[#allocation6 + $0xa8] sm:$0xff]
    %v290 = vmul.f32 %v287, %v288
    %v291 = vmul.f32 %v286, %v289
    %292 = vst [vmem:[#allocation2 + $0x10] sm:$0xff] %v290
    %293 = vst [vmem:[#allocation2 + $0x18] sm:$0xff] %v291
    %294 = vrot.lane.b32.xlu0 %v266, 30
    %v295 = vpop.permute.xlu0 %294
    %296 = vrot.lane.b32.xlu0 %v267, 30
    %v297 = vpop.permute.xlu0 %296
    %vm298 = vcmp.lt.s32.totalorder %v63, 30
    %v299 = vsel %vm298, %v295, %v297
    %v300 = vsel %vm298, %v297, %v295
    %v301 = vld [vmem:[#allocation6 + $0xb0] sm:$0xff]
    %v302 = vld [vmem:[#allocation6 + $0xb8] sm:$0xff]
    %v303 = vmul.f32 %v300, %v301
    %v304 = vmul.f32 %v299, %v302
    %305 = vst [vmem:[#allocation2 + $0x20] sm:$0xff] %v303
    %306 = vst [vmem:[#allocation2 + $0x28] sm:$0xff] %v304
    %307 = vrot.lane.b32.xlu0 %v266, 2
    %v308 = vpop.permute.xlu0 %307
    %309 = vrot.lane.b32.xlu0 %v267, 2
    %v310 = vpop.permute.xlu0 %309
    %vm311 = vcmp.lt.s32.totalorder %v63, 2
    %v312 = vsel %vm311, %v308, %v310
    %v313 = vsel %vm311, %v310, %v308
    %v314 = vld [vmem:[#allocation6 + $0xc0] sm:$0xff]
    %v315 = vld [vmem:[#allocation6 + $0xc8] sm:$0xff]
    %v316 = vmul.f32 %v313, %v314
    %v317 = vmul.f32 %v312, %v315
    %318 = vst [vmem:[#allocation2 + $0x30] sm:$0xff] %v316
    %319 = vst [vmem:[#allocation2 + $0x38] sm:$0xff] %v317
    %320 = vst [vmem:[#allocation2 + $0x40] sm:$0xff] %v266
    %321 = vst [vmem:[#allocation2 + $0x48] sm:$0xff] %v267
    %322 = vrot.lane.b32.xlu0 %v266, 126
    %v323 = vpop.permute.xlu0 %322
    %324 = vrot.lane.b32.xlu0 %v267, 126
    %v325 = vpop.permute.xlu0 %324
    %vm326 = vcmp.lt.s32.totalorder %v63, 126
    %v327 = vsel %vm326, %v323, %v325
    %v328 = vsel %vm326, %v325, %v323
    %v329 = vld [vmem:[#allocation6 + $0xe0] sm:$0xff]
    %v330 = vld [vmem:[#allocation6 + $0xe8] sm:$0xff]
    %v331 = vmul.f32 %v327, %v329
    %v332 = vmul.f32 %v328, %v330
    %333 = vst [vmem:[#allocation2 + $0x50] sm:$0xff] %v331
    %334 = vst [vmem:[#allocation2 + $0x58] sm:$0xff] %v332
    %335 = vrot.lane.b32.xlu0 %v266, 98
    %v336 = vpop.permute.xlu0 %335
    %337 = vrot.lane.b32.xlu0 %v267, 98
    %v338 = vpop.permute.xlu0 %337
    %vm339 = vcmp.lt.s32.totalorder %v63, 98
    %v340 = vsel %vm339, %v336, %v338
    %v341 = vsel %vm339, %v338, %v336
    %v342 = vld [vmem:[#allocation6 + $0xf0] sm:$0xff]
    %v343 = vld [vmem:[#allocation6 + $0xf8] sm:$0xff]
    %v344 = vmul.f32 %v340, %v342
    %v345 = vmul.f32 %v341, %v343
    %346 = vst [vmem:[#allocation2 + $0x60] sm:$0xff] %v344
    %347 = vst [vmem:[#allocation2 + $0x68] sm:$0xff] %v345
    %348 = vrot.lane.b32.xlu0 %v266, 96
    %v349 = vpop.permute.xlu0 %348
    %350 = vrot.lane.b32.xlu0 %v267, 96
    %v351 = vpop.permute.xlu0 %350
    %vm352 = vcmp.lt.s32.totalorder %v63, 96
    %v353 = vsel %vm352, %v349, %v351
    %v354 = vsel %vm352, %v351, %v349
    %v355 = vld [vmem:[#allocation6 + $0x100] sm:$0xff]
    %v356 = vld [vmem:[#allocation6 + $0x108] sm:$0xff]
    %v357 = vmul.f32 %v353, %v355
    %v358 = vmul.f32 %v354, %v356
    %359 = vst [vmem:[#allocation2 + $0x70] sm:$0xff] %v357
    %360 = vst [vmem:[#allocation2 + $0x78] sm:$0xff] %v358
    %361 = vrot.lane.b32.xlu0 %v266, 94
    %v362 = vpop.permute.xlu0 %361
    %363 = vrot.lane.b32.xlu0 %v267, 94
    %v364 = vpop.permute.xlu0 %363
    %vm365 = vcmp.lt.s32.totalorder %v63, 94
    %v366 = vsel %vm365, %v362, %v364
    %v367 = vsel %vm365, %v364, %v362
    %v368 = vld [vmem:[#allocation6 + $0x110] sm:$0xff]
    %v369 = vld [vmem:[#allocation6 + $0x118] sm:$0xff]
    %v370 = vmul.f32 %v366, %v368
    %v371 = vmul.f32 %v367, %v369
    %372 = vst [vmem:[#allocation2 + $0x80] sm:$0xff] %v370
    %373 = vst [vmem:[#allocation2 + $0x88] sm:$0xff] %v371
    %v374 = vld [vmem:[#allocation2] sm:$0xff]
    %v375 = vld [vmem:[#allocation2 + $0x8] sm:$0xff]
    %v376 = vld [vmem:[#allocation2 + $0x10] sm:$0xff]
    %v377 = vld [vmem:[#allocation2 + $0x18] sm:$0xff]
    %v378 = vld [vmem:[#allocation2 + $0x20] sm:$0xff]
    %v379 = vld [vmem:[#allocation2 + $0x28] sm:$0xff]
    %v380 = vld [vmem:[#allocation2 + $0x30] sm:$0xff]
    %v381 = vld [vmem:[#allocation2 + $0x38] sm:$0xff]
    %v382 = vld [vmem:[#allocation2 + $0x40] sm:$0xff]
    %v383 = vld [vmem:[#allocation2 + $0x48] sm:$0xff]
    %v384 = vld [vmem:[#allocation2 + $0x50] sm:$0xff]
    %v385 = vld [vmem:[#allocation2 + $0x58] sm:$0xff]
    %v386 = vld [vmem:[#allocation2 + $0x60] sm:$0xff]
    %v387 = vld [vmem:[#allocation2 + $0x68] sm:$0xff]
    %v388 = vld [vmem:[#allocation2 + $0x70] sm:$0xff]
    %v389 = vld [vmem:[#allocation2 + $0x78] sm:$0xff]
    %v390 = vld [vmem:[#allocation2 + $0x80] sm:$0xff]
    %v391 = vld [vmem:[#allocation2 + $0x88] sm:$0xff]
    %393 = vset.pattern.permute.xlu0 0
    %394 = vperm.xlu0 %393, %v55
    %v395 = vpop.permute.xlu0 %394
    %v398 = vsel %vm189, %v53, 0
    %400 = vmatprep.subr.mxu0 %v375
    %401 = vmatpush1.msra.mxu0 %v374
    %402 = vmatprep.subr.mxu0 %v377
    %403 = vmatpush1.msra.mxu0 %v376
    %404 = vmatprep.subr.mxu0 %v379
    %405 = vmatpush1.msra.mxu0 %v378
    %406 = vmatprep.subr.mxu0 %v381
    %407 = vmatpush1.msra.mxu0 %v380
    %408 = vmatprep.subr.mxu0 %v383
    %409 = vmatpush1.msra.mxu0 %v382
    %410 = vmatprep.subr.mxu0 %v385
    %411 = vmatpush1.msra.mxu0 %v384
    %412 = vmatprep.subr.mxu0 %v387
    %413 = vmatpush1.msra.mxu0 %v386
    %414 = vmatprep.subr.mxu0 %v389
    %415 = vmatpush1.msra.mxu0 %v388
    %416 = vmatprep.subr.mxu0 %v391
    %417 = vmatpush1.msra.mxu0 %v390
    %418 = vmatprep.subr.mxu0 0.0
    %419 = vmatpush1.msra.mxu0 0.0
    %420 = vmatprep.subr.mxu0 0.0
    %421 = vmatpush1.msra.mxu0 0.0
    %422 = vmatprep.subr.mxu0 0.0
    %423 = vmatpush1.msra.mxu0 0.0
    %424 = vmatprep.subr.mxu0 0.0
    %425 = vmatpush1.msra.mxu0 0.0
    %426 = vmatprep.subr.mxu0 0.0
    %427 = vmatpush1.msra.mxu0 0.0
    %428 = vmatprep.subr.mxu0 0.0
    %429 = vmatpush1.msra.mxu0 0.0
    %430 = vmatprep.subr.mxu0 0.0
    %431 = vmatpush1.msra.mxu0 0.0
    %432 = vmatprep.subr.mxu0 0.0
    %433 = vmatpush1.msra.mxu0 0.0
    %434 = vmatprep.subr.mxu0 0.0
    %435 = vmatpush1.msra.mxu0 0.0
    %436 = vmatprep.subr.mxu0 0.0
    %437 = vmatpush1.msra.mxu0 0.0
    %438 = vmatprep.subr.mxu0 0.0
    %439 = vmatpush1.msra.mxu0 0.0
    %440 = vmatprep.subr.mxu0 0.0
    %441 = vmatpush1.msra.mxu0 0.0
    %442 = vmatprep.subr.mxu0 0.0
    %443 = vmatpush1.msra.mxu0 0.0
    %444 = vmatprep.subr.mxu0 0.0
    %445 = vmatpush1.msra.mxu0 0.0
    %446 = vmatprep.subr.mxu0 0.0
    %447 = vmatpush1.msra.mxu0 0.0
    %448 = vmatprep.subr.mxu0 0.0
    %449 = vmatpush1.msra.mxu0 0.0
    %450 = vmatprep.subr.mxu0 0.0
    %451 = vmatpush1.msra.mxu0 0.0
    %452 = vmatprep.subr.mxu0 0.0
    %453 = vmatpush1.msra.mxu0 0.0
    %454 = vmatprep.subr.mxu0 0.0
    %455 = vmatpush1.msra.mxu0 0.0
    %456 = vmatprep.subr.mxu0 0.0
    %457 = vmatpush1.msra.mxu0 0.0
    %458 = vmatprep.subr.mxu0 0.0
    %459 = vmatpush1.msra.mxu0 0.0
    %460 = vmatprep.subr.mxu0 0.0
    %461 = vmatpush1.msra.mxu0 0.0
    %462 = vmatprep.subr.mxu0 0.0
    %463 = vmatpush1.msra.mxu0 0.0
    %464 = vmatprep.mubr.f32.mxu0 0.0
    %465 = vmatmul.mubr.f32.gmra.mrb[0].mxu0 %v398
    %v466 = vpop.f32.mrb[0].mxu0
    %v467 = vadd.f32 %v395, %v466
    %v468 = vpop.f32.mrb[0].mxu0
    %v469 = vadd.f32 %v395, %v468
    %470 = vdwg.mxu0
    %v471 = vadd.f32 %v467, %v56
    %v472 = vadd.f32 %v469, %v57
    %473 = vst [vmem:[#allocation8] sm:$0xff] %v471
    %474 = vst [vmem:[#allocation8 + $0x8] sm:$0xff] %v472
    %s475 = scalar_lea.vmem [#allocation3], 16
    %v476 = vld [vmem:[%s475] sm:$0xff]
    %v477 = vld [vmem:[%s475 + $0x8] sm:$0xff]
    %478 = vrot.lane.b32.xlu0 %v476, 17
    %v479 = vpop.permute.xlu0 %478
    %480 = vrot.lane.b32.xlu0 %v477, 17
    %v481 = vpop.permute.xlu0 %480
    %v482 = vsel %vm64, %v479, %v481
    %v483 = vsel %vm64, %v481, %v479
    %v484 = vld [vmem:[#allocation6] sm:$0xff]
    %v485 = vld [vmem:[#allocation6 + $0x8] sm:$0xff]
    %v486 = vmul.f32 %v483, %v484
    %v487 = vmul.f32 %v482, %v485
    %488 = vst [vmem:[#allocation2] sm:$0xff] %v486
    %489 = vst [vmem:[#allocation2 + $0x8] sm:$0xff] %v487
    %490 = vrot.lane.b32.xlu0 %v476, 16
    %v491 = vpop.permute.xlu0 %490
    %492 = vrot.lane.b32.xlu0 %v477, 16
    %v493 = vpop.permute.xlu0 %492
    %v494 = vsel %vm77, %v491, %v493
    %v495 = vsel %vm77, %v493, %v491
    %v496 = vld [vmem:[#allocation6 + $0x10] sm:$0xff]
    %v497 = vld [vmem:[#allocation6 + $0x18] sm:$0xff]
    %v498 = vmul.f32 %v495, %v496
    %v499 = vmul.f32 %v494, %v497
    %500 = vst [vmem:[#allocation2 + $0x10] sm:$0xff] %v498
    %501 = vst [vmem:[#allocation2 + $0x18] sm:$0xff] %v499
    %502 = vrot.lane.b32.xlu0 %v476, 15
    %v503 = vpop.permute.xlu0 %502
    %504 = vrot.lane.b32.xlu0 %v477, 15
    %v505 = vpop.permute.xlu0 %504
    %v506 = vsel %vm90, %v503, %v505
    %v507 = vsel %vm90, %v505, %v503
    %v508 = vld [vmem:[#allocation6 + $0x20] sm:$0xff]
    %v509 = vld [vmem:[#allocation6 + $0x28] sm:$0xff]
    %v510 = vmul.f32 %v507, %v508
    %v511 = vmul.f32 %v506, %v509
    %512 = vst [vmem:[#allocation2 + $0x20] sm:$0xff] %v510
    %513 = vst [vmem:[#allocation2 + $0x28] sm:$0xff] %v511
    %514 = vrot.lane.b32.xlu0 %v476, 1
    %v515 = vpop.permute.xlu0 %514
    %516 = vrot.lane.b32.xlu0 %v477, 1
    %v517 = vpop.permute.xlu0 %516
    %v518 = vsel %vm103, %v515, %v517
    %v519 = vsel %vm103, %v517, %v515
    %v520 = vld [vmem:[#allocation6 + $0x30] sm:$0xff]
    %v521 = vld [vmem:[#allocation6 + $0x38] sm:$0xff]
    %v522 = vmul.f32 %v519, %v520
    %v523 = vmul.f32 %v518, %v521
    %524 = vst [vmem:[#allocation2 + $0x30] sm:$0xff] %v522
    %525 = vst [vmem:[#allocation2 + $0x38] sm:$0xff] %v523
    %526 = vst [vmem:[#allocation2 + $0x40] sm:$0xff] %v476
    %527 = vst [vmem:[#allocation2 + $0x48] sm:$0xff] %v477
    %528 = vrot.lane.b32.xlu0 %v476, 127
    %v529 = vpop.permute.xlu0 %528
    %530 = vrot.lane.b32.xlu0 %v477, 127
    %v531 = vpop.permute.xlu0 %530
    %v532 = vsel %vm118, %v529, %v531
    %v533 = vsel %vm118, %v531, %v529
    %v534 = vld [vmem:[#allocation6 + $0x50] sm:$0xff]
    %v535 = vld [vmem:[#allocation6 + $0x58] sm:$0xff]
    %v536 = vmul.f32 %v532, %v534
    %v537 = vmul.f32 %v533, %v535
    %538 = vst [vmem:[#allocation2 + $0x50] sm:$0xff] %v536
    %539 = vst [vmem:[#allocation2 + $0x58] sm:$0xff] %v537
    %540 = vrot.lane.b32.xlu0 %v476, 113
    %v541 = vpop.permute.xlu0 %540
    %542 = vrot.lane.b32.xlu0 %v477, 113
    %v543 = vpop.permute.xlu0 %542
    %v544 = vsel %vm131, %v541, %v543
    %v545 = vsel %vm131, %v543, %v541
    %v546 = vld [vmem:[#allocation6 + $0x60] sm:$0xff]
    %v547 = vld [vmem:[#allocation6 + $0x68] sm:$0xff]
    %v548 = vmul.f32 %v544, %v546
    %v549 = vmul.f32 %v545, %v547
    %550 = vst [vmem:[#allocation2 + $0x60] sm:$0xff] %v548
    %551 = vst [vmem:[#allocation2 + $0x68] sm:$0xff] %v549
    %552 = vrot.lane.b32.xlu0 %v476, 112
    %v553 = vpop.permute.xlu0 %552
    %554 = vrot.lane.b32.xlu0 %v477, 112
    %v555 = vpop.permute.xlu0 %554
    %v556 = vsel %vm144, %v553, %v555
    %v557 = vsel %vm144, %v555, %v553
    %v558 = vld [vmem:[#allocation6 + $0x70] sm:$0xff]
    %v559 = vld [vmem:[#allocation6 + $0x78] sm:$0xff]
    %v560 = vmul.f32 %v556, %v558
    %v561 = vmul.f32 %v557, %v559
    %562 = vst [vmem:[#allocation2 + $0x70] sm:$0xff] %v560
    %563 = vst [vmem:[#allocation2 + $0x78] sm:$0xff] %v561
    %564 = vrot.lane.b32.xlu0 %v476, 111
    %v565 = vpop.permute.xlu0 %564
    %566 = vrot.lane.b32.xlu0 %v477, 111
    %v567 = vpop.permute.xlu0 %566
    %v568 = vsel %vm157, %v565, %v567
    %v569 = vsel %vm157, %v567, %v565
    %v570 = vld [vmem:[#allocation6 + $0x80] sm:$0xff]
    %v571 = vld [vmem:[#allocation6 + $0x88] sm:$0xff]
    %v572 = vmul.f32 %v568, %v570
    %v573 = vmul.f32 %v569, %v571
    %574 = vst [vmem:[#allocation2 + $0x80] sm:$0xff] %v572
    %575 = vst [vmem:[#allocation2 + $0x88] sm:$0xff] %v573
    %v576 = vld [vmem:[#allocation2] sm:$0xff]
    %v577 = vld [vmem:[#allocation2 + $0x8] sm:$0xff]
    %v578 = vld [vmem:[#allocation2 + $0x10] sm:$0xff]
    %v579 = vld [vmem:[#allocation2 + $0x18] sm:$0xff]
    %v580 = vld [vmem:[#allocation2 + $0x20] sm:$0xff]
    %v581 = vld [vmem:[#allocation2 + $0x28] sm:$0xff]
    %v582 = vld [vmem:[#allocation2 + $0x30] sm:$0xff]
    %v583 = vld [vmem:[#allocation2 + $0x38] sm:$0xff]
    %v584 = vld [vmem:[#allocation2 + $0x40] sm:$0xff]
    %v585 = vld [vmem:[#allocation2 + $0x48] sm:$0xff]
    %v586 = vld [vmem:[#allocation2 + $0x50] sm:$0xff]
    %v587 = vld [vmem:[#allocation2 + $0x58] sm:$0xff]
    %v588 = vld [vmem:[#allocation2 + $0x60] sm:$0xff]
    %v589 = vld [vmem:[#allocation2 + $0x68] sm:$0xff]
    %v590 = vld [vmem:[#allocation2 + $0x70] sm:$0xff]
    %v591 = vld [vmem:[#allocation2 + $0x78] sm:$0xff]
    %v592 = vld [vmem:[#allocation2 + $0x80] sm:$0xff]
    %v593 = vld [vmem:[#allocation2 + $0x88] sm:$0xff]
    %594 = vmatprep.subr.mxu0 %v577
    %595 = vmatpush1.msra.mxu0 %v576
    %596 = vmatprep.subr.mxu0 %v579
    %597 = vmatpush1.msra.mxu0 %v578
    %598 = vmatprep.subr.mxu0 %v581
    %599 = vmatpush1.msra.mxu0 %v580
    %600 = vmatprep.subr.mxu0 %v583
    %601 = vmatpush1.msra.mxu0 %v582
    %602 = vmatprep.subr.mxu0 %v585
    %603 = vmatpush1.msra.mxu0 %v584
    %604 = vmatprep.subr.mxu0 %v587
    %605 = vmatpush1.msra.mxu0 %v586
    %606 = vmatprep.subr.mxu0 %v589
    %607 = vmatpush1.msra.mxu0 %v588
    %608 = vmatprep.subr.mxu0 %v591
    %609 = vmatpush1.msra.mxu0 %v590
    %610 = vmatprep.subr.mxu0 %v593
    %611 = vmatpush1.msra.mxu0 %v592
    %612 = vmatprep.subr.mxu0 0.0
    %613 = vmatpush1.msra.mxu0 0.0
    %614 = vmatprep.subr.mxu0 0.0
    %615 = vmatpush1.msra.mxu0 0.0
    %616 = vmatprep.subr.mxu0 0.0
    %617 = vmatpush1.msra.mxu0 0.0
    %618 = vmatprep.subr.mxu0 0.0
    %619 = vmatpush1.msra.mxu0 0.0
    %620 = vmatprep.subr.mxu0 0.0
    %621 = vmatpush1.msra.mxu0 0.0
    %622 = vmatprep.subr.mxu0 0.0
    %623 = vmatpush1.msra.mxu0 0.0
    %624 = vmatprep.subr.mxu0 0.0
    %625 = vmatpush1.msra.mxu0 0.0
    %626 = vmatprep.subr.mxu0 0.0
    %627 = vmatpush1.msra.mxu0 0.0
    %628 = vmatprep.subr.mxu0 0.0
    %629 = vmatpush1.msra.mxu0 0.0
    %630 = vmatprep.subr.mxu0 0.0
    %631 = vmatpush1.msra.mxu0 0.0
    %632 = vmatprep.subr.mxu0 0.0
    %633 = vmatpush1.msra.mxu0 0.0
    %634 = vmatprep.subr.mxu0 0.0
    %635 = vmatpush1.msra.mxu0 0.0
    %636 = vmatprep.subr.mxu0 0.0
    %637 = vmatpush1.msra.mxu0 0.0
    %638 = vmatprep.subr.mxu0 0.0
    %639 = vmatpush1.msra.mxu0 0.0
    %640 = vmatprep.subr.mxu0 0.0
    %641 = vmatpush1.msra.mxu0 0.0
    %642 = vmatprep.subr.mxu0 0.0
    %643 = vmatpush1.msra.mxu0 0.0
    %644 = vmatprep.subr.mxu0 0.0
    %645 = vmatpush1.msra.mxu0 0.0
    %646 = vmatprep.subr.mxu0 0.0
    %647 = vmatpush1.msra.mxu0 0.0
    %648 = vmatprep.subr.mxu0 0.0
    %649 = vmatpush1.msra.mxu0 0.0
    %650 = vmatprep.subr.mxu0 0.0
    %651 = vmatpush1.msra.mxu0 0.0
    %652 = vmatprep.subr.mxu0 0.0
    %653 = vmatpush1.msra.mxu0 0.0
    %654 = vmatprep.subr.mxu0 0.0
    %655 = vmatpush1.msra.mxu0 0.0
    %656 = vmatprep.subr.mxu0 0.0
    %657 = vmatpush1.msra.mxu0 0.0
    %658 = vmatprep.mubr.f32.mxu0 0.0
    %659 = vmatmul.mubr.f32.gmra.mrb[0].mxu0 %v191
    %v660 = vpop.f32.mrb[0].mxu0
    %v661 = vadd.f32 %v187, %v660
    %v662 = vpop.f32.mrb[0].mxu0
    %v663 = vadd.f32 %v187, %v662
    %664 = vdwg.mxu0
    %v665 = vmul.f32 %v661, 0.0
    %v666 = vmul.f32 %v663, 0.0
    %v667 = vmax.f32 %v661, %v665
    %v668 = vmax.f32 %v663, %v666
    %669 = vrot.lane.b32.xlu0 %v667, 34
    %v670 = vpop.permute.xlu0 %669
    %671 = vrot.lane.b32.xlu0 %v668, 34
    %v672 = vpop.permute.xlu0 %671
    %v673 = vsel %vm272, %v670, %v672
    %v674 = vsel %vm272, %v672, %v670
    %v675 = vld [vmem:[#allocation6 + $0x90] sm:$0xff]
    %v676 = vld [vmem:[#allocation6 + $0x98] sm:$0xff]
    %v677 = vmul.f32 %v674, %v675
    %v678 = vmul.f32 %v673, %v676
    %679 = vst [vmem:[#allocation2] sm:$0xff] %v677
    %680 = vst [vmem:[#allocation2 + $0x8] sm:$0xff] %v678
    %681 = vrot.lane.b32.xlu0 %v667, 32
    %v682 = vpop.permute.xlu0 %681
    %683 = vrot.lane.b32.xlu0 %v668, 32
    %v684 = vpop.permute.xlu0 %683
    %v685 = vsel %vm285, %v682, %v684
    %v686 = vsel %vm285, %v684, %v682
    %v687 = vld [vmem:[#allocation6 + $0xa0] sm:$0xff]
    %v688 = vld [vmem:[#allocation6 + $0xa8] sm:$0xff]
    %v689 = vmul.f32 %v686, %v687
    %v690 = vmul.f32 %v685, %v688
    %691 = vst [vmem:[#allocation2 + $0x10] sm:$0xff] %v689
    %692 = vst [vmem:[#allocation2 + $0x18] sm:$0xff] %v690
    %693 = vrot.lane.b32.xlu0 %v667, 30
    %v694 = vpop.permute.xlu0 %693
    %695 = vrot.lane.b32.xlu0 %v668, 30
    %v696 = vpop.permute.xlu0 %695
    %v697 = vsel %vm298, %v694, %v696
    %v698 = vsel %vm298, %v696, %v694
    %v699 = vld [vmem:[#allocation6 + $0xb0] sm:$0xff]
    %v700 = vld [vmem:[#allocation6 + $0xb8] sm:$0xff]
    %v701 = vmul.f32 %v698, %v699
    %v702 = vmul.f32 %v697, %v700
    %703 = vst [vmem:[#allocation2 + $0x20] sm:$0xff] %v701
    %704 = vst [vmem:[#allocation2 + $0x28] sm:$0xff] %v702
    %705 = vrot.lane.b32.xlu0 %v667, 2
    %v706 = vpop.permute.xlu0 %705
    %707 = vrot.lane.b32.xlu0 %v668, 2
    %v708 = vpop.permute.xlu0 %707
    %v709 = vsel %vm311, %v706, %v708
    %v710 = vsel %vm311, %v708, %v706
    %v711 = vld [vmem:[#allocation6 + $0xc0] sm:$0xff]
    %v712 = vld [vmem:[#allocation6 + $0xc8] sm:$0xff]
    %v713 = vmul.f32 %v710, %v711
    %v714 = vmul.f32 %v709, %v712
    %715 = vst [vmem:[#allocation2 + $0x30] sm:$0xff] %v713
    %716 = vst [vmem:[#allocation2 + $0x38] sm:$0xff] %v714
    %717 = vst [vmem:[#allocation2 + $0x40] sm:$0xff] %v667
    %718 = vst [vmem:[#allocation2 + $0x48] sm:$0xff] %v668
    %719 = vrot.lane.b32.xlu0 %v667, 126
    %v720 = vpop.permute.xlu0 %719
    %721 = vrot.lane.b32.xlu0 %v668, 126
    %v722 = vpop.permute.xlu0 %721
    %v723 = vsel %vm326, %v720, %v722
    %v724 = vsel %vm326, %v722, %v720
    %v725 = vld [vmem:[#allocation6 + $0xe0] sm:$0xff]
    %v726 = vld [vmem:[#allocation6 + $0xe8] sm:$0xff]
    %v727 = vmul.f32 %v723, %v725
    %v728 = vmul.f32 %v724, %v726
    %729 = vst [vmem:[#allocation2 + $0x50] sm:$0xff] %v727
    %730 = vst [vmem:[#allocation2 + $0x58] sm:$0xff] %v728
    %731 = vrot.lane.b32.xlu0 %v667, 98
    %v732 = vpop.permute.xlu0 %731
    %733 = vrot.lane.b32.xlu0 %v668, 98
    %v734 = vpop.permute.xlu0 %733
    %v735 = vsel %vm339, %v732, %v734
    %v736 = vsel %vm339, %v734, %v732
    %v737 = vld [vmem:[#allocation6 + $0xf0] sm:$0xff]
    %v738 = vld [vmem:[#allocation6 + $0xf8] sm:$0xff]
    %v739 = vmul.f32 %v735, %v737
    %v740 = vmul.f32 %v736, %v738
    %741 = vst [vmem:[#allocation2 + $0x60] sm:$0xff] %v739
    %742 = vst [vmem:[#allocation2 + $0x68] sm:$0xff] %v740
    %743 = vrot.lane.b32.xlu0 %v667, 96
    %v744 = vpop.permute.xlu0 %743
    %745 = vrot.lane.b32.xlu0 %v668, 96
    %v746 = vpop.permute.xlu0 %745
    %v747 = vsel %vm352, %v744, %v746
    %v748 = vsel %vm352, %v746, %v744
    %v749 = vld [vmem:[#allocation6 + $0x100] sm:$0xff]
    %v750 = vld [vmem:[#allocation6 + $0x108] sm:$0xff]
    %v751 = vmul.f32 %v747, %v749
    %v752 = vmul.f32 %v748, %v750
    %753 = vst [vmem:[#allocation2 + $0x70] sm:$0xff] %v751
    %754 = vst [vmem:[#allocation2 + $0x78] sm:$0xff] %v752
    %755 = vrot.lane.b32.xlu0 %v667, 94
    %v756 = vpop.permute.xlu0 %755
    %757 = vrot.lane.b32.xlu0 %v668, 94
    %v758 = vpop.permute.xlu0 %757
    %v759 = vsel %vm365, %v756, %v758
    %v760 = vsel %vm365, %v758, %v756
    %v761 = vld [vmem:[#allocation6 + $0x110] sm:$0xff]
    %v762 = vld [vmem:[#allocation6 + $0x118] sm:$0xff]
    %v763 = vmul.f32 %v759, %v761
    %v764 = vmul.f32 %v760, %v762
    %765 = vst [vmem:[#allocation2 + $0x80] sm:$0xff] %v763
    %766 = vst [vmem:[#allocation2 + $0x88] sm:$0xff] %v764
    %v767 = vld [vmem:[#allocation2] sm:$0xff]
    %v768 = vld [vmem:[#allocation2 + $0x8] sm:$0xff]
    %v769 = vld [vmem:[#allocation2 + $0x10] sm:$0xff]
    %v770 = vld [vmem:[#allocation2 + $0x18] sm:$0xff]
    %v771 = vld [vmem:[#allocation2 + $0x20] sm:$0xff]
    %v772 = vld [vmem:[#allocation2 + $0x28] sm:$0xff]
    %v773 = vld [vmem:[#allocation2 + $0x30] sm:$0xff]
    %v774 = vld [vmem:[#allocation2 + $0x38] sm:$0xff]
    %v775 = vld [vmem:[#allocation2 + $0x40] sm:$0xff]
    %v776 = vld [vmem:[#allocation2 + $0x48] sm:$0xff]
    %v777 = vld [vmem:[#allocation2 + $0x50] sm:$0xff]
    %v778 = vld [vmem:[#allocation2 + $0x58] sm:$0xff]
    %v779 = vld [vmem:[#allocation2 + $0x60] sm:$0xff]
    %v780 = vld [vmem:[#allocation2 + $0x68] sm:$0xff]
    %v781 = vld [vmem:[#allocation2 + $0x70] sm:$0xff]
    %v782 = vld [vmem:[#allocation2 + $0x78] sm:$0xff]
    %v783 = vld [vmem:[#allocation2 + $0x80] sm:$0xff]
    %v784 = vld [vmem:[#allocation2 + $0x88] sm:$0xff]
    %785 = vmatprep.subr.mxu0 %v768
    %786 = vmatpush1.msra.mxu0 %v767
    %787 = vmatprep.subr.mxu0 %v770
    %788 = vmatpush1.msra.mxu0 %v769
    %789 = vmatprep.subr.mxu0 %v772
    %790 = vmatpush1.msra.mxu0 %v771
    %791 = vmatprep.subr.mxu0 %v774
    %792 = vmatpush1.msra.mxu0 %v773
    %793 = vmatprep.subr.mxu0 %v776
    %794 = vmatpush1.msra.mxu0 %v775
    %795 = vmatprep.subr.mxu0 %v778
    %796 = vmatpush1.msra.mxu0 %v777
    %797 = vmatprep.subr.mxu0 %v780
    %798 = vmatpush1.msra.mxu0 %v779
    %799 = vmatprep.subr.mxu0 %v782
    %800 = vmatpush1.msra.mxu0 %v781
    %801 = vmatprep.subr.mxu0 %v784
    %802 = vmatpush1.msra.mxu0 %v783
    %803 = vmatprep.subr.mxu0 0.0
    %804 = vmatpush1.msra.mxu0 0.0
    %805 = vmatprep.subr.mxu0 0.0
    %806 = vmatpush1.msra.mxu0 0.0
    %807 = vmatprep.subr.mxu0 0.0
    %808 = vmatpush1.msra.mxu0 0.0
    %809 = vmatprep.subr.mxu0 0.0
    %810 = vmatpush1.msra.mxu0 0.0
    %811 = vmatprep.subr.mxu0 0.0
    %812 = vmatpush1.msra.mxu0 0.0
    %813 = vmatprep.subr.mxu0 0.0
    %814 = vmatpush1.msra.mxu0 0.0
    %815 = vmatprep.subr.mxu0 0.0
    %816 = vmatpush1.msra.mxu0 0.0
    %817 = vmatprep.subr.mxu0 0.0
    %818 = vmatpush1.msra.mxu0 0.0
    %819 = vmatprep.subr.mxu0 0.0
    %820 = vmatpush1.msra.mxu0 0.0
    %821 = vmatprep.subr.mxu0 0.0
    %822 = vmatpush1.msra.mxu0 0.0
    %823 = vmatprep.subr.mxu0 0.0
    %824 = vmatpush1.msra.mxu0 0.0
    %825 = vmatprep.subr.mxu0 0.0
    %826 = vmatpush1.msra.mxu0 0.0
    %827 = vmatprep.subr.mxu0 0.0
    %828 = vmatpush1.msra.mxu0 0.0
    %829 = vmatprep.subr.mxu0 0.0
    %830 = vmatpush1.msra.mxu0 0.0
    %831 = vmatprep.subr.mxu0 0.0
    %832 = vmatpush1.msra.mxu0 0.0
    %833 = vmatprep.subr.mxu0 0.0
    %834 = vmatpush1.msra.mxu0 0.0
    %835 = vmatprep.subr.mxu0 0.0
    %836 = vmatpush1.msra.mxu0 0.0
    %837 = vmatprep.subr.mxu0 0.0
    %838 = vmatpush1.msra.mxu0 0.0
    %839 = vmatprep.subr.mxu0 0.0
    %840 = vmatpush1.msra.mxu0 0.0
    %841 = vmatprep.subr.mxu0 0.0
    %842 = vmatpush1.msra.mxu0 0.0
    %843 = vmatprep.subr.mxu0 0.0
    %844 = vmatpush1.msra.mxu0 0.0
    %845 = vmatprep.subr.mxu0 0.0
    %846 = vmatpush1.msra.mxu0 0.0
    %847 = vmatprep.subr.mxu0 0.0
    %848 = vmatpush1.msra.mxu0 0.0
    %849 = vmatprep.mubr.f32.mxu0 0.0
    %850 = vmatmul.mubr.f32.gmra.mrb[0].mxu0 %v398
    %v851 = vpop.f32.mrb[0].mxu0
    %v852 = vadd.f32 %v395, %v851
    %v853 = vpop.f32.mrb[0].mxu0
    %v854 = vadd.f32 %v395, %v853
    %855 = vdwg.mxu0
    %v856 = vadd.f32 %v852, %v476
    %v857 = vadd.f32 %v854, %v477
    %s858 = scalar_lea.vmem [#allocation8], 16
    %859 = vst [vmem:[%s858] sm:$0xff] %v856
    %860 = vst [vmem:[%s858 + $0x8] sm:$0xff] %v857
    // Predicated region
    $region34: #{tpu_custom_call.1} parent=1 // pred_check
      _
    $region35: #{tpu_custom_call.1} parent=1 // pred_check_branch
      %862 = sbr.rel (0) target = $region37
    $region36: #{tpu_custom_call.1} parent=1 // pred_region
      %s864 = ssub.s32 512, 512
      %865 = vsyncadd [#allocation5], %s864
      %s866 = sshll.u32 [#allocation8], 4
      %s867 = int_to_ptr.vmem [resolvable:$true] %s866
      %872 = dma.vmem_to_hbm [thread:$0]  %s867, 512, %s6, [#allocation5], 256, 256, 16
    $region37: #{tpu_custom_call.1} parent=1 // pred_fallthru
      _
    // Predicated region
    $region38: #{tpu_custom_call.1} parent=1 // pred_check
      _
    $region39: #{tpu_custom_call.1} parent=1 // pred_check_branch
      %874 = sbr.rel (0) target = $region41
    $region40: #{tpu_custom_call.1} parent=1 // pred_region
      %875 = dma.done [#allocation5], 512
    $region41: #{tpu_custom_call.1} parent=1 // pred_fallthru
      _
    %876 = vsyncpa [#allocation4], 1
    %877 = vsyncpa [#allocation7], 1
    %878 = vsyncpa [#allocation5], 1

</llo_original>
